<compile_context>
chip_gen: v7x
topology: tpu7x:2x2x1
jax: 0.10.0
libtpu: 0.0.40
codegen_flags: <defaults>
</compile_context>

<pallas_src>
import jax
import jax.numpy as jnp
from jax.experimental import pallas as pl
from jax.experimental.pallas import tpu as pltpu

H = 60            # GRU / attention hidden size (module value)
HP = 64           # sublane-aligned padded gate width (pad is exact, see above)
IN_DIM = 18       # 3 spectrum + 4 mutation + 11 semantic
SM_IN = 7         # spectrum + mutation, contiguous x[:, 0:7]
SEM_IN, SEM_OUT = 11, 3
GRU_IN = 10       # 3 + 4 + 3
ALL_OUT = 8
OUT_DIM = 2

LANE = 128
TB_MAX = 2048


def _cdiv(a, b):
    return -(-a // b)


def _round_up(a, b):
    return _cdiv(a, b) * b


# ------------------------------ kernel --------------------------------------
# All activations are (features, TB): features on sublanes, batch on lanes.

def mlp_forward_kernel(
    xsm_ref, xsem_ref,
    w_sem_ref, b_sem_ref,
    w_ih0_sm_ref, w_ih0_sem_ref, b_g0_ref, b_hn0_ref,
    w_ih1_ref, b_g1_ref, b_hn1_ref,
    w_all_ref, b_all_ref,
    w_out_ref, b_out_ref,
    out_ref,
):
    x_sm = xsm_ref[...]                                 # (7,  TB)
    x_sem = xsem_ref[...]                               # (11, TB)

    # mlp_semantic + ReLU  (nn.Dropout: eval-mode identity)
    sem = jnp.maximum(
        jnp.dot(w_sem_ref[...], x_sem, preferred_element_type=jnp.float32)
        + b_sem_ref[...],
        0.0,
    )                                                   # (3, TB)

    # ---- GRU layer 0 (input = cat([spectrum, mutation, sem]), h0 = 0) ------
    gi0 = (
        jnp.dot(w_ih0_sm_ref[...], x_sm, preferred_element_type=jnp.float32)
        + jnp.dot(w_ih0_sem_ref[...], sem, preferred_element_type=jnp.float32)
        + b_g0_ref[...]                                 # b_ih0 (+ b_hh0 on r/z rows)
    )                                                   # (3*HP, TB), gates [r|z|n]
    r0 = jax.nn.sigmoid(gi0[0:HP, :])
    n0 = jnp.tanh(gi0[2 * HP:3 * HP, :] + r0 * b_hn0_ref[...])
    h1 = jax.nn.sigmoid(-gi0[HP:2 * HP, :]) * n0        # (1 - z) * n ; z*h_prev == 0

    # ---- GRU layer 1 (inter-layer dropout: eval-mode identity, h0 = 0) -----
    gi1 = (
        jnp.dot(w_ih1_ref[...], h1, preferred_element_type=jnp.float32)
        + b_g1_ref[...]
    )                                                   # (3*HP, TB)
    r1 = jax.nn.sigmoid(gi1[0:HP, :])
    n1 = jnp.tanh(gi1[2 * HP:3 * HP, :] + r1 * b_hn1_ref[...])
    h2 = jax.nn.sigmoid(-gi1[HP:2 * HP, :]) * n1        # (HP, TB)
    # seq_len == 1  =>  gru out == hidden[-1] == h2, and the length-1 attention
    # softmax is exactly 1.0  =>  context_vector == h2 (dead path removed).

    # mlp_all_features + ReLU (dropout: identity), then output layer
    feat = jnp.maximum(
        jnp.dot(w_all_ref[...], h2, preferred_element_type=jnp.float32)
        + b_all_ref[...],
        0.0,
    )                                                   # (8, TB)
    out_ref[...] = (
        jnp.dot(w_out_ref[...], feat, preferred_element_type=jnp.float32)
        + b_out_ref[...]
    )                                                   # (2, TB) lane-dense store


# --------------------- host-side parameter re-layout ------------------------

def pack_params(p):
    """Transpose to (out, in), pad gates H->HP, fold h0==0 biases, split W_ih0."""

    def pad_gate_rows(w_t):                 # (3H, K) -> (3HP, K), zeros in pad rows
        k = w_t.shape[1]
        out = jnp.zeros((3 * HP, k), jnp.float32)
        for g in range(3):
            out = out.at[g * HP: g * HP + H, :].set(w_t[g * H:(g + 1) * H, :])
        return out

    def pad_cols(w_t):                      # (M, H) -> (M, HP), zero pad columns
        return jnp.pad(w_t, ((0, 0), (0, HP - H)))

    def fold_gate_bias(b_ih, b_hh):         # -> (3HP,1) gate bias, (HP,1) n-gate b_hh
        b_gate = jnp.concatenate(
            [b_ih[0, :2 * H] + b_hh[0, :2 * H], b_ih[0, 2 * H:]], axis=-1)
        b_gate = pad_gate_rows(b_gate[:, None])
        b_hn = jnp.pad(b_hh[0, 2 * H:], (0, HP - H))[:, None]
        return b_gate, b_hn

    w_ih0_t = pad_gate_rows(p["w_ih0"].T)           # (192, 10)
    b_g0, b_hn0 = fold_gate_bias(p["b_ih0"], p["b_hh0"])
    b_g1, b_hn1 = fold_gate_bias(p["b_ih1"], p["b_hh1"])

    return dict(
        w_sem=p["w_sem"].T,                          # (3, 11)
        b_sem=p["b_sem"].T,                          # (3, 1)
        w_ih0_sm=w_ih0_t[:, 0:SM_IN],                # (192, 7)
        w_ih0_sem=w_ih0_t[:, SM_IN:GRU_IN],          # (192, 3)
        b_g0=b_g0, b_hn0=b_hn0,
        w_ih1=pad_cols(pad_gate_rows(p["w_ih1"].T)),  # (192, 64)
        b_g1=b_g1, b_hn1=b_hn1,
        w_all=pad_cols(p["w_all"].T),                # (8, 64)
        b_all=p["b_all"].T,                          # (8, 1)
        w_out=p["w_out"].T,                          # (2, 8)
        b_out=p["b_out"].T,                          # (2, 1)
    )


# ------------------------------ wrapper --------------------------------------

def mlp_forward(x, params, *, tb=None):
    """Batch-on-lanes Pallas forward. Pads the batch to a multiple of the tile."""
    B = x.shape[0]

    if tb is None:
        if B <= LANE:
            tb = LANE                                   # one minimal lane tile
        else:
            n_blk = max(2, _cdiv(B, TB_MAX))            # >=2 blocks (v7x 2 TCs)
            if n_blk % 2:                               # even block count
                n_blk += 1
            tb = _round_up(_cdiv(B, n_blk), LANE)       # divides padded batch evenly
    else:
        tb = _round_up(tb, LANE)
    n_blocks = _cdiv(B, tb)
    b_pad = n_blocks * tb

    # host-side split + transpose (free XLA ops; avoids in-kernel tile-straddling slices)
    x_sm_t = x[:, 0:SM_IN].T                            # (7,  B)
    x_sem_t = x[:, SM_IN:IN_DIM].T                      # (11, B)
    if b_pad != B:
        x_sm_t = jnp.pad(x_sm_t, ((0, 0), (0, b_pad - B)))
        x_sem_t = jnp.pad(x_sem_t, ((0, 0), (0, b_pad - B)))

    pk = pack_params(params)
    args = (
        x_sm_t, x_sem_t,
        pk["w_sem"], pk["b_sem"],
        pk["w_ih0_sm"], pk["w_ih0_sem"], pk["b_g0"], pk["b_hn0"],
        pk["w_ih1"], pk["b_g1"], pk["b_hn1"],
        pk["w_all"], pk["b_all"],
        pk["w_out"], pk["b_out"],
    )

    # x / out tiled along the lane (batch) axis; weights VMEM-resident.
    xsm_spec = pl.BlockSpec((SM_IN, tb), lambda i: (0, i))
    xsem_spec = pl.BlockSpec((SEM_IN, tb), lambda i: (0, i))
    const_spec = lambda a: pl.BlockSpec(a.shape, lambda i: (0, 0))
    in_specs = [xsm_spec, xsem_spec] + [const_spec(a) for a in args[2:]]
    out_specs = pl.BlockSpec((OUT_DIM, tb), lambda i: (0, i))

    # Advisory cost hint for XLA scheduling around the custom call.
    flops_per_row = 2 * (SEM_OUT * SEM_IN + 3 * HP * SM_IN + 3 * HP * SEM_OUT
                         + 3 * HP * HP + ALL_OUT * HP + OUT_DIM * ALL_OUT)
    weight_bytes = sum(int(a.size) * 4 for a in args[2:])
    cost = pl.CostEstimate(
        flops=flops_per_row * b_pad,
        transcendentals=6 * HP * b_pad,
        bytes_accessed=(IN_DIM + OUT_DIM) * 4 * b_pad + weight_bytes,
    )

    out_t = pl.pallas_call(
        mlp_forward_kernel,
        out_shape=jax.ShapeDtypeStruct((OUT_DIM, b_pad), jnp.float32),
        grid=(n_blocks,),
        in_specs=in_specs,
        out_specs=out_specs,
        compiler_params=pltpu.CompilerParams(
            dimension_semantics=("parallel",),          # shards across v7x's 2 TCs
            vmem_limit_bytes=32 * 1024 * 1024,          # v5e default is only 16 MiB
        ),
        cost_estimate=cost,
    )(*args)
    return out_t[:, :B].T                               # back to (B, 2)


# ---------------- deterministic parameter construction ----------------------

def xavier_uniform(key, shape_in_out):
    fan_in, fan_out = shape_in_out
    limit = (6.0 / (fan_in + fan_out)) ** 0.5
    # built directly in (in, out) layout
    return jax.random.uniform(key, (fan_in, fan_out), jnp.float32, -limit, limit)


def make_params(key):
    ks = jax.random.split(key, 16)
    inv_sqrt_h = 1.0 / (H ** 0.5)

    def unif(k, shape):
        return jax.random.uniform(k, shape, jnp.float32, -inv_sqrt_h, inv_sqrt_h)

    params = {
        # mlp_semantic: Linear(11, 3), xavier weight, zero bias
        "w_sem": xavier_uniform(ks[0], (SEM_IN, SEM_OUT)),
        "b_sem": jnp.zeros((1, SEM_OUT), jnp.float32),
        # GRU layer 0 (input 10 -> hidden 60), gate order [r, z, n]
        "w_ih0": xavier_uniform(ks[1], (GRU_IN, 3 * H)),
        "w_hh0": xavier_uniform(ks[2], (H, 3 * H)),
        "b_ih0": unif(ks[3], (1, 3 * H)),
        "b_hh0": unif(ks[4], (1, 3 * H)),
        # GRU layer 1 (hidden 60 -> hidden 60)
        "w_ih1": xavier_uniform(ks[5], (H, 3 * H)),
        "w_hh1": xavier_uniform(ks[6], (H, 3 * H)),
        "b_ih1": unif(ks[7], (1, 3 * H)),
        "b_hh1": unif(ks[8], (1, 3 * H)),
        # attention: Linear(120, 60) + Linear(60, 1, bias=False)
        # (used only by the unsimplified reference; kernel proves it is dead code)
        "w_attn": xavier_uniform(ks[9], (2 * H, H)),
        "b_attn": unif(ks[10], (1, H)),
        "w_v": xavier_uniform(ks[11], (H, 1)),
        # mlp_all_features: Linear(60, 8), xavier weight
        "w_all": xavier_uniform(ks[12], (H, ALL_OUT)),
        "b_all": unif(ks[13], (1, ALL_OUT)),
        # output_layer: Linear(8, 2)
        "w_out": xavier_uniform(ks[14], (ALL_OUT, OUT_DIM)),
        "b_out": unif(ks[15], (1, OUT_DIM)),
    }
    return params


# ---------------- pure-JAX reference (UNsimplified original-module math) ----

def mlp_forward_ref(x, p):
    sem = jnp.maximum(x[:, 7:18] @ p["w_sem"] + p["b_sem"], 0.0)
    x10 = jnp.concatenate([x[:, 0:3], x[:, 3:7], sem], axis=-1)
    hz = jnp.zeros((x.shape[0], H), jnp.float32)

    def cell(xin, h, w_ih, w_hh, b_ih, b_hh):
        gi = xin @ w_ih + b_ih
        gh = h @ w_hh + b_hh
        r = jax.nn.sigmoid(gi[:, :H] + gh[:, :H])
        z = jax.nn.sigmoid(gi[:, H:2 * H] + gh[:, H:2 * H])
        n = jnp.tanh(gi[:, 2 * H:] + r * gh[:, 2 * H:])
        return (1 - z) * n + z * h

    h1 = cell(x10, hz, p["w_ih0"], p["w_hh0"], p["b_ih0"], p["b_hh0"])
    h2 = cell(h1, hz, p["w_ih1"], p["w_hh1"], p["b_ih1"], p["b_hh1"])
    # attention over the length-1 GRU output sequence
    energy = jnp.tanh(jnp.concatenate([h2, h2], axis=-1) @ p["w_attn"] + p["b_attn"])
    score = energy @ p["w_v"]                              # (B, 1)
    attn_w = jax.nn.softmax(score, axis=1)                 # == 1.0 (length-1 axis)
    context = h2 * attn_w
    feat = jnp.maximum(context @ p["w_all"] + p["b_all"], 0.0)
    return feat @ p["w_out"] + p["b_out"]


if __name__ == "__main__":
    key = jax.random.PRNGKey(0)
    k_x, k_p = jax.random.split(key)

    params = make_params(k_p)

    # small demo batch; single 128-lane tile (grid=(1,))
    B = 16
    x = jax.random.normal(k_x, (B, IN_DIM), jnp.float32)
    out = jax.block_until_ready(mlp_forward(x, params))
    ref = mlp_forward_ref(x, params)
    assert out.shape == (B, OUT_DIM)
    assert jnp.allclose(out, ref, atol=1e-5, rtol=1e-5), "kernel mismatch vs reference"

    # larger ragged batch: exercises even multi-block grid + lane padding
    B2 = 300
    x2 = jax.random.normal(jax.random.PRNGKey(7), (B2, IN_DIM), jnp.float32)
    out2 = jax.block_until_ready(mlp_forward(x2, params))
    ref2 = mlp_forward_ref(x2, params)
    assert out2.shape == (B2, OUT_DIM)
    assert jnp.allclose(out2, ref2, atol=1e-5, rtol=1e-5), "kernel mismatch (padded batch)"

    # explicit-tile path (grid=(3,)) to exercise the batch grid
    out3 = jax.block_until_ready(mlp_forward(x2, params, tb=128))
    assert jnp.allclose(out3, ref2, atol=1e-5, rtol=1e-5), "kernel mismatch (tb=128)"

    # TODO(synk): dropout layers are stochastic training-only ops; implemented as
    # eval-mode identity (matches module.eval() semantics).
    print("KERNEL_OK")
</pallas_src>

<mosaic_0001>
module attributes {stable_mosaic.version = 11 : i64} {
  func.func @mlp_forward_kernel(%arg0: i32, %arg1: memref<7x128xf32, #tpu.memory_space<vmem>>, %arg2: memref<11x128xf32, #tpu.memory_space<vmem>>, %arg3: memref<3x11xf32, #tpu.memory_space<vmem>>, %arg4: memref<3x1xf32, #tpu.memory_space<vmem>>, %arg5: memref<192x7xf32, #tpu.memory_space<vmem>>, %arg6: memref<192x3xf32, #tpu.memory_space<vmem>>, %arg7: memref<192x1xf32, #tpu.memory_space<vmem>>, %arg8: memref<64x1xf32, #tpu.memory_space<vmem>>, %arg9: memref<192x64xf32, #tpu.memory_space<vmem>>, %arg10: memref<192x1xf32, #tpu.memory_space<vmem>>, %arg11: memref<64x1xf32, #tpu.memory_space<vmem>>, %arg12: memref<8x64xf32, #tpu.memory_space<vmem>>, %arg13: memref<8x1xf32, #tpu.memory_space<vmem>>, %arg14: memref<2x8xf32, #tpu.memory_space<vmem>>, %arg15: memref<2x1xf32, #tpu.memory_space<vmem>>, %arg16: memref<2x128xf32, #tpu.memory_space<vmem>>) attributes {dimension_semantics = [#tpu.dimension_semantics<parallel>], iteration_bounds = array<i64: 1>, scalar_prefetch = 0 : i64, scratch_operands = 0 : i64, tpu.core_type = #tpu.core_type<tc>, window_params = [{transform_indices = @transform_0, window_bounds = array<i64: 7, 128>}, {transform_indices = @transform_1, window_bounds = array<i64: 11, 128>}, {pipeline_mode = #tpu.pipeline_mode<synchronous>, transform_indices = @transform_2, window_bounds = array<i64: 3, 11>}, {pipeline_mode = #tpu.pipeline_mode<synchronous>, transform_indices = @transform_3, window_bounds = array<i64: 3, 1>}, {pipeline_mode = #tpu.pipeline_mode<synchronous>, transform_indices = @transform_4, window_bounds = array<i64: 192, 7>}, {pipeline_mode = #tpu.pipeline_mode<synchronous>, transform_indices = @transform_5, window_bounds = array<i64: 192, 3>}, {pipeline_mode = #tpu.pipeline_mode<synchronous>, transform_indices = @transform_6, window_bounds = array<i64: 192, 1>}, {pipeline_mode = #tpu.pipeline_mode<synchronous>, transform_indices = @transform_7, window_bounds = array<i64: 64, 1>}, {pipeline_mode = #tpu.pipeline_mode<synchronous>, transform_indices = @transform_8, window_bounds = array<i64: 192, 64>}, {pipeline_mode = #tpu.pipeline_mode<synchronous>, transform_indices = @transform_9, window_bounds = array<i64: 192, 1>}, {pipeline_mode = #tpu.pipeline_mode<synchronous>, transform_indices = @transform_10, window_bounds = array<i64: 64, 1>}, {pipeline_mode = #tpu.pipeline_mode<synchronous>, transform_indices = @transform_11, window_bounds = array<i64: 8, 64>}, {pipeline_mode = #tpu.pipeline_mode<synchronous>, transform_indices = @transform_12, window_bounds = array<i64: 8, 1>}, {pipeline_mode = #tpu.pipeline_mode<synchronous>, transform_indices = @transform_13, window_bounds = array<i64: 2, 8>}, {pipeline_mode = #tpu.pipeline_mode<synchronous>, transform_indices = @transform_14, window_bounds = array<i64: 2, 1>}, {transform_indices = @transform_15, window_bounds = array<i64: 2, 128>}]} {
    %c0 = arith.constant 0 : index
    %c0_0 = arith.constant 0 : index
    %0 = vector.load %arg1[%c0, %c0_0] : memref<7x128xf32, #tpu.memory_space<vmem>>, vector<7x128xf32>
    %c0_1 = arith.constant 0 : index
    %c0_2 = arith.constant 0 : index
    %1 = vector.load %arg2[%c0_1, %c0_2] : memref<11x128xf32, #tpu.memory_space<vmem>>, vector<11x128xf32>
    %c0_3 = arith.constant 0 : index
    %c0_4 = arith.constant 0 : index
    %2 = vector.load %arg3[%c0_3, %c0_4] : memref<3x11xf32, #tpu.memory_space<vmem>>, vector<3x11xf32>
    %cst = arith.constant dense<0.000000e+00> : vector<3x128xf32>
    %3 = tpu.matmul %2, %1, %cst {dimension_numbers = #tpu.dot_dimension_numbers<[1], [0], [0], [1], [0, 0, 1, 1], [], []>} : vector<3x11xf32>, vector<11x128xf32>, vector<3x128xf32> -> vector<3x128xf32>
    %c0_5 = arith.constant 0 : index
    %c0_6 = arith.constant 0 : index
    %4 = vector.load %arg4[%c0_5, %c0_6] : memref<3x1xf32, #tpu.memory_space<vmem>>, vector<3x1xf32>
    %5 = vector.broadcast %4 : vector<3x1xf32> to vector<3x128xf32>
    %6 = arith.addf %3, %5 : vector<3x128xf32>
    %cst_7 = arith.constant 0.000000e+00 : f32
    %7 = vector.broadcast %cst_7 : f32 to vector<3x128xf32>
    %8 = arith.maximumf %6, %7 : vector<3x128xf32>
    %c0_8 = arith.constant 0 : index
    %c0_9 = arith.constant 0 : index
    %9 = vector.load %arg5[%c0_8, %c0_9] : memref<192x7xf32, #tpu.memory_space<vmem>>, vector<192x7xf32>
    %cst_10 = arith.constant dense<0.000000e+00> : vector<192x128xf32>
    %10 = tpu.matmul %9, %0, %cst_10 {dimension_numbers = #tpu.dot_dimension_numbers<[1], [0], [0], [1], [0, 0, 1, 1], [], []>} : vector<192x7xf32>, vector<7x128xf32>, vector<192x128xf32> -> vector<192x128xf32>
    %c0_11 = arith.constant 0 : index
    %c0_12 = arith.constant 0 : index
    %11 = vector.load %arg6[%c0_11, %c0_12] : memref<192x3xf32, #tpu.memory_space<vmem>>, vector<192x3xf32>
    %cst_13 = arith.constant dense<0.000000e+00> : vector<192x128xf32>
    %12 = tpu.matmul %11, %8, %cst_13 {dimension_numbers = #tpu.dot_dimension_numbers<[1], [0], [0], [1], [0, 0, 1, 1], [], []>} : vector<192x3xf32>, vector<3x128xf32>, vector<192x128xf32> -> vector<192x128xf32>
    %13 = arith.addf %10, %12 : vector<192x128xf32>
    %c0_14 = arith.constant 0 : index
    %c0_15 = arith.constant 0 : index
    %14 = vector.load %arg7[%c0_14, %c0_15] : memref<192x1xf32, #tpu.memory_space<vmem>>, vector<192x1xf32>
    %15 = vector.broadcast %14 : vector<192x1xf32> to vector<192x128xf32>
    %16 = arith.addf %13, %15 : vector<192x128xf32>
    %17 = vector.extract_strided_slice %16 {offsets = [0, 0], sizes = [64, 128], strides = [1, 1]} : vector<192x128xf32> to vector<64x128xf32>
    %18 = arith.negf %17 : vector<64x128xf32>
    %19 = math.exp %18 : vector<64x128xf32>
    %cst_16 = arith.constant 1.000000e+00 : f32
    %20 = vector.broadcast %cst_16 : f32 to vector<64x128xf32>
    %21 = arith.addf %20, %19 : vector<64x128xf32>
    %22 = arith.divf %20, %21 : vector<64x128xf32>
    %23 = vector.extract_strided_slice %16 {offsets = [128, 0], sizes = [64, 128], strides = [1, 1]} : vector<192x128xf32> to vector<64x128xf32>
    %c0_17 = arith.constant 0 : index
    %c0_18 = arith.constant 0 : index
    %24 = vector.load %arg8[%c0_17, %c0_18] : memref<64x1xf32, #tpu.memory_space<vmem>>, vector<64x1xf32>
    %25 = vector.broadcast %24 : vector<64x1xf32> to vector<64x128xf32>
    %26 = arith.mulf %22, %25 : vector<64x128xf32>
    %27 = arith.addf %23, %26 : vector<64x128xf32>
    %28 = math.tanh %27 : vector<64x128xf32>
    %29 = vector.extract_strided_slice %16 {offsets = [64, 0], sizes = [64, 128], strides = [1, 1]} : vector<192x128xf32> to vector<64x128xf32>
    %cst_19 = arith.constant 0.000000e+00 : f32
    %30 = vector.broadcast %cst_19 : f32 to vector<64x128xf32>
    %31 = arith.subf %30, %29 : vector<64x128xf32>
    %32 = arith.negf %31 : vector<64x128xf32>
    %33 = math.exp %32 : vector<64x128xf32>
    %cst_20 = arith.constant 1.000000e+00 : f32
    %34 = vector.broadcast %cst_20 : f32 to vector<64x128xf32>
    %35 = arith.addf %34, %33 : vector<64x128xf32>
    %36 = arith.divf %34, %35 : vector<64x128xf32>
    %37 = arith.mulf %36, %28 : vector<64x128xf32>
    %c0_21 = arith.constant 0 : index
    %c0_22 = arith.constant 0 : index
    %38 = vector.load %arg9[%c0_21, %c0_22] : memref<192x64xf32, #tpu.memory_space<vmem>>, vector<192x64xf32>
    %cst_23 = arith.constant dense<0.000000e+00> : vector<192x128xf32>
    %39 = tpu.matmul %38, %37, %cst_23 {dimension_numbers = #tpu.dot_dimension_numbers<[1], [0], [0], [1], [0, 0, 1, 1], [], []>} : vector<192x64xf32>, vector<64x128xf32>, vector<192x128xf32> -> vector<192x128xf32>
    %c0_24 = arith.constant 0 : index
    %c0_25 = arith.constant 0 : index
    %40 = vector.load %arg10[%c0_24, %c0_25] : memref<192x1xf32, #tpu.memory_space<vmem>>, vector<192x1xf32>
    %41 = vector.broadcast %40 : vector<192x1xf32> to vector<192x128xf32>
    %42 = arith.addf %39, %41 : vector<192x128xf32>
    %43 = vector.extract_strided_slice %42 {offsets = [0, 0], sizes = [64, 128], strides = [1, 1]} : vector<192x128xf32> to vector<64x128xf32>
    %44 = arith.negf %43 : vector<64x128xf32>
    %45 = math.exp %44 : vector<64x128xf32>
    %cst_26 = arith.constant 1.000000e+00 : f32
    %46 = vector.broadcast %cst_26 : f32 to vector<64x128xf32>
    %47 = arith.addf %46, %45 : vector<64x128xf32>
    %48 = arith.divf %46, %47 : vector<64x128xf32>
    %49 = vector.extract_strided_slice %42 {offsets = [128, 0], sizes = [64, 128], strides = [1, 1]} : vector<192x128xf32> to vector<64x128xf32>
    %c0_27 = arith.constant 0 : index
    %c0_28 = arith.constant 0 : index
    %50 = vector.load %arg11[%c0_27, %c0_28] : memref<64x1xf32, #tpu.memory_space<vmem>>, vector<64x1xf32>
    %51 = vector.broadcast %50 : vector<64x1xf32> to vector<64x128xf32>
    %52 = arith.mulf %48, %51 : vector<64x128xf32>
    %53 = arith.addf %49, %52 : vector<64x128xf32>
    %54 = math.tanh %53 : vector<64x128xf32>
    %55 = vector.extract_strided_slice %42 {offsets = [64, 0], sizes = [64, 128], strides = [1, 1]} : vector<192x128xf32> to vector<64x128xf32>
    %cst_29 = arith.constant 0.000000e+00 : f32
    %56 = vector.broadcast %cst_29 : f32 to vector<64x128xf32>
    %57 = arith.subf %56, %55 : vector<64x128xf32>
    %58 = arith.negf %57 : vector<64x128xf32>
    %59 = math.exp %58 : vector<64x128xf32>
    %cst_30 = arith.constant 1.000000e+00 : f32
    %60 = vector.broadcast %cst_30 : f32 to vector<64x128xf32>
    %61 = arith.addf %60, %59 : vector<64x128xf32>
    %62 = arith.divf %60, %61 : vector<64x128xf32>
    %63 = arith.mulf %62, %54 : vector<64x128xf32>
    %c0_31 = arith.constant 0 : index
    %c0_32 = arith.constant 0 : index
    %64 = vector.load %arg12[%c0_31, %c0_32] : memref<8x64xf32, #tpu.memory_space<vmem>>, vector<8x64xf32>
    %cst_33 = arith.constant dense<0.000000e+00> : vector<8x128xf32>
    %65 = tpu.matmul %64, %63, %cst_33 {dimension_numbers = #tpu.dot_dimension_numbers<[1], [0], [0], [1], [0, 0, 1, 1], [], []>} : vector<8x64xf32>, vector<64x128xf32>, vector<8x128xf32> -> vector<8x128xf32>
    %c0_34 = arith.constant 0 : index
    %c0_35 = arith.constant 0 : index
    %66 = vector.load %arg13[%c0_34, %c0_35] : memref<8x1xf32, #tpu.memory_space<vmem>>, vector<8x1xf32>
    %67 = vector.broadcast %66 : vector<8x1xf32> to vector<8x128xf32>
    %68 = arith.addf %65, %67 : vector<8x128xf32>
    %cst_36 = arith.constant 0.000000e+00 : f32
    %69 = vector.broadcast %cst_36 : f32 to vector<8x128xf32>
    %70 = arith.maximumf %68, %69 : vector<8x128xf32>
    %c0_37 = arith.constant 0 : index
    %c0_38 = arith.constant 0 : index
    %71 = vector.load %arg14[%c0_37, %c0_38] : memref<2x8xf32, #tpu.memory_space<vmem>>, vector<2x8xf32>
    %cst_39 = arith.constant dense<0.000000e+00> : vector<2x128xf32>
    %72 = tpu.matmul %71, %70, %cst_39 {dimension_numbers = #tpu.dot_dimension_numbers<[1], [0], [0], [1], [0, 0, 1, 1], [], []>} : vector<2x8xf32>, vector<8x128xf32>, vector<2x128xf32> -> vector<2x128xf32>
    %c0_40 = arith.constant 0 : index
    %c0_41 = arith.constant 0 : index
    %73 = vector.load %arg15[%c0_40, %c0_41] : memref<2x1xf32, #tpu.memory_space<vmem>>, vector<2x1xf32>
    %74 = vector.broadcast %73 : vector<2x1xf32> to vector<2x128xf32>
    %75 = arith.addf %72, %74 : vector<2x128xf32>
    %c0_42 = arith.constant 0 : index
    %c0_43 = arith.constant 0 : index
    %76 = vector.load %arg16[%c0_42, %c0_43] : memref<2x128xf32, #tpu.memory_space<vmem>>, vector<2x128xf32>
    tpu.vector_store %arg16[%c0_42, %c0_43], %75 {strides = array<i32>} : memref<2x128xf32, #tpu.memory_space<vmem>>, vector<2x128xf32>,
    return
  }
  func.func @transform_0(%arg0: i32) -> (i32, i32) {
    %c0_i32 = arith.constant 0 : i32
    %c0_i32_0 = arith.constant 0 : i32
    return %c0_i32, %arg0 : i32, i32
  }
  func.func @transform_1(%arg0: i32) -> (i32, i32) {
    %c0_i32 = arith.constant 0 : i32
    %c0_i32_0 = arith.constant 0 : i32
    return %c0_i32, %arg0 : i32, i32
  }
  func.func @transform_2(%arg0: i32) -> (i32, i32) {
    %c0_i32 = arith.constant 0 : i32
    %c0_i32_0 = arith.constant 0 : i32
    %c0_i32_1 = arith.constant 0 : i32
    return %c0_i32, %c0_i32_0 : i32, i32
  }
  func.func @transform_3(%arg0: i32) -> (i32, i32) {
    %c0_i32 = arith.constant 0 : i32
    %c0_i32_0 = arith.constant 0 : i32
    %c0_i32_1 = arith.constant 0 : i32
    return %c0_i32, %c0_i32_0 : i32, i32
  }
  func.func @transform_4(%arg0: i32) -> (i32, i32) {
    %c0_i32 = arith.constant 0 : i32
    %c0_i32_0 = arith.constant 0 : i32
    %c0_i32_1 = arith.constant 0 : i32
    return %c0_i32, %c0_i32_0 : i32, i32
  }
  func.func @transform_5(%arg0: i32) -> (i32, i32) {
    %c0_i32 = arith.constant 0 : i32
    %c0_i32_0 = arith.constant 0 : i32
    %c0_i32_1 = arith.constant 0 : i32
    return %c0_i32, %c0_i32_0 : i32, i32
  }
  func.func @transform_6(%arg0: i32) -> (i32, i32) {
    %c0_i32 = arith.constant 0 : i32
    %c0_i32_0 = arith.constant 0 : i32
    %c0_i32_1 = arith.constant 0 : i32
    return %c0_i32, %c0_i32_0 : i32, i32
  }
  func.func @transform_7(%arg0: i32) -> (i32, i32) {
    %c0_i32 = arith.constant 0 : i32
    %c0_i32_0 = arith.constant 0 : i32
    %c0_i32_1 = arith.constant 0 : i32
    return %c0_i32, %c0_i32_0 : i32, i32
  }
  func.func @transform_8(%arg0: i32) -> (i32, i32) {
    %c0_i32 = arith.constant 0 : i32
    %c0_i32_0 = arith.constant 0 : i32
    %c0_i32_1 = arith.constant 0 : i32
    return %c0_i32, %c0_i32_0 : i32, i32
  }
  func.func @transform_9(%arg0: i32) -> (i32, i32) {
    %c0_i32 = arith.constant 0 : i32
    %c0_i32_0 = arith.constant 0 : i32
    %c0_i32_1 = arith.constant 0 : i32
    return %c0_i32, %c0_i32_0 : i32, i32
  }
  func.func @transform_10(%arg0: i32) -> (i32, i32) {
    %c0_i32 = arith.constant 0 : i32
    %c0_i32_0 = arith.constant 0 : i32
    %c0_i32_1 = arith.constant 0 : i32
    return %c0_i32, %c0_i32_0 : i32, i32
  }
  func.func @transform_11(%arg0: i32) -> (i32, i32) {
    %c0_i32 = arith.constant 0 : i32
    %c0_i32_0 = arith.constant 0 : i32
    %c0_i32_1 = arith.constant 0 : i32
    return %c0_i32, %c0_i32_0 : i32, i32
  }
  func.func @transform_12(%arg0: i32) -> (i32, i32) {
    %c0_i32 = arith.constant 0 : i32
    %c0_i32_0 = arith.constant 0 : i32
    %c0_i32_1 = arith.constant 0 : i32
    return %c0_i32, %c0_i32_0 : i32, i32
  }
  func.func @transform_13(%arg0: i32) -> (i32, i32) {
    %c0_i32 = arith.constant 0 : i32
    %c0_i32_0 = arith.constant 0 : i32
    %c0_i32_1 = arith.constant 0 : i32
    return %c0_i32, %c0_i32_0 : i32, i32
  }
  func.func @transform_14(%arg0: i32) -> (i32, i32) {
    %c0_i32 = arith.constant 0 : i32
    %c0_i32_0 = arith.constant 0 : i32
    %c0_i32_1 = arith.constant 0 : i32
    return %c0_i32, %c0_i32_0 : i32, i32
  }
  func.func @transform_15(%arg0: i32) -> (i32, i32) {
    %c0_i32 = arith.constant 0 : i32
    %c0_i32_0 = arith.constant 0 : i32
    return %c0_i32, %arg0 : i32, i32
  }
}

</mosaic_0001>

<llo_original>
// kernel: tpu_custom_call.1
$region0: #{tpu_custom_call.1}
  #allocation0 [shape = 'u32[]', space=smem, size = 0x4, offset = 0x4, fixed_abs, tag = 'smem constant byte address 0x4 - core index']
  #allocation1 [shape = 'u32[144,128]{1,0:T(1,128)}', space=vmem, size = 0x12000, scoped, tag = 'internal scratch']
  %s0 = inlined_call_operand.vmem [shape: f32[7,128], index: 0, kind: input, shape index: {}]
  %s1 = inlined_call_operand.vmem [shape: f32[11,128], index: 1, kind: input, shape index: {}]
  %s2 = inlined_call_operand.vmem [shape: f32[3,11], index: 2, kind: input, shape index: {}]
  %s3 = inlined_call_operand.vmem [shape: f32[3,1], index: 3, kind: input, shape index: {}]
  %s4 = inlined_call_operand.vmem [shape: f32[192,7], index: 4, kind: input, shape index: {}]
  %s5 = inlined_call_operand.vmem [shape: f32[192,3], index: 5, kind: input, shape index: {}]
  %s6 = inlined_call_operand.vmem [shape: f32[192,1], index: 6, kind: input, shape index: {}]
  %s7 = inlined_call_operand.vmem [shape: f32[64,1], index: 7, kind: input, shape index: {}]
  %s8 = inlined_call_operand.vmem [shape: f32[192,64], index: 8, kind: input, shape index: {}]
  %s9 = inlined_call_operand.vmem [shape: f32[192,1], index: 9, kind: input, shape index: {}]
  %s10 = inlined_call_operand.vmem [shape: f32[64,1], index: 10, kind: input, shape index: {}]
  %s11 = inlined_call_operand.vmem [shape: f32[8,64], index: 11, kind: input, shape index: {}]
  %s12 = inlined_call_operand.vmem [shape: f32[8,1], index: 12, kind: input, shape index: {}]
  %s13 = inlined_call_operand.vmem [shape: f32[2,8], index: 13, kind: input, shape index: {}]
  %s14 = inlined_call_operand.vmem [shape: f32[2,1], index: 14, kind: input, shape index: {}]
  %s15 = inlined_call_operand.hbm [shape: f32[2,128], index: 15, kind: output, shape index: {}]
  %s16 = sld [smem:[#allocation0]]
  $region70: #{tpu_custom_call.1} parent=0
    _
  %s18 = ssub.s32 1, %s16
  %s19 = scalar_select 0, %s18, %s16
  $region1: #{tpu_custom_call.1} parent=0
    #allocation2 [shape = 'u8[1024]{0}', space=vmem, size = 0x400, scoped, tag = 'output window, operand 0, single buffered']
    #allocation3 [shape = 's32[1]{0}', space=sflag, size = 0x4, scoped, tag = 'scoped memory for tpu_custom_call.1']
    %20 = vsyncpa [#allocation3], 0
    // Predicated region
    $region2: #{tpu_custom_call.1} parent=1 // pred_check
      _
    $region3: #{tpu_custom_call.1} parent=1 // pred_check_branch
      %22 = sbr.rel (0) target = $region5
    $region4: #{tpu_custom_call.1} parent=1 // pred_region
      _
    $region5: #{tpu_custom_call.1} parent=1 // pred_fallthru
      _
    // Predicated region
    $region6: #{tpu_custom_call.1} parent=1 // pred_check
      _
    $region7: #{tpu_custom_call.1} parent=1 // pred_check_branch
      %24 = sbr.rel (0) target = $region9
    $region8: #{tpu_custom_call.1} parent=1 // pred_region
      _
    $region9: #{tpu_custom_call.1} parent=1 // pred_fallthru
      _
    // Predicated region
    $region10: #{tpu_custom_call.1} parent=1 // pred_check
      _
    $region11: #{tpu_custom_call.1} parent=1 // pred_check_branch
      %26 = sbr.rel (0) target = $region13
    $region12: #{tpu_custom_call.1} parent=1 // pred_region
      _
    $region13: #{tpu_custom_call.1} parent=1 // pred_fallthru
      _
    // Predicated region
    $region14: #{tpu_custom_call.1} parent=1 // pred_check
      _
    $region15: #{tpu_custom_call.1} parent=1 // pred_check_branch
      %28 = sbr.rel (0) target = $region17
    $region16: #{tpu_custom_call.1} parent=1 // pred_region
      _
    $region17: #{tpu_custom_call.1} parent=1 // pred_fallthru
      _
    // Predicated region
    $region18: #{tpu_custom_call.1} parent=1 // pred_check
      _
    $region19: #{tpu_custom_call.1} parent=1 // pred_check_branch
      %30 = sbr.rel (0) target = $region21
    $region20: #{tpu_custom_call.1} parent=1 // pred_region
      _
    $region21: #{tpu_custom_call.1} parent=1 // pred_fallthru
      _
    // Predicated region
    $region22: #{tpu_custom_call.1} parent=1 // pred_check
      _
    $region23: #{tpu_custom_call.1} parent=1 // pred_check_branch
      %32 = sbr.rel (0) target = $region25
    $region24: #{tpu_custom_call.1} parent=1 // pred_region
      _
    $region25: #{tpu_custom_call.1} parent=1 // pred_fallthru
      _
    // Predicated region
    $region26: #{tpu_custom_call.1} parent=1 // pred_check
      _
    $region27: #{tpu_custom_call.1} parent=1 // pred_check_branch
      %34 = sbr.rel (0) target = $region29
    $region28: #{tpu_custom_call.1} parent=1 // pred_region
      _
    $region29: #{tpu_custom_call.1} parent=1 // pred_fallthru
      _
    // Predicated region
    $region30: #{tpu_custom_call.1} parent=1 // pred_check
      _
    $region31: #{tpu_custom_call.1} parent=1 // pred_check_branch
      %36 = sbr.rel (0) target = $region33
    $region32: #{tpu_custom_call.1} parent=1 // pred_region
      _
    $region33: #{tpu_custom_call.1} parent=1 // pred_fallthru
      _
    // Predicated region
    $region34: #{tpu_custom_call.1} parent=1 // pred_check
      _
    $region35: #{tpu_custom_call.1} parent=1 // pred_check_branch
      %38 = sbr.rel (0) target = $region37
    $region36: #{tpu_custom_call.1} parent=1 // pred_region
      _
    $region37: #{tpu_custom_call.1} parent=1 // pred_fallthru
      _
    // Predicated region
    $region38: #{tpu_custom_call.1} parent=1 // pred_check
      _
    $region39: #{tpu_custom_call.1} parent=1 // pred_check_branch
      %40 = sbr.rel (0) target = $region41
    $region40: #{tpu_custom_call.1} parent=1 // pred_region
      _
    $region41: #{tpu_custom_call.1} parent=1 // pred_fallthru
      _
    // Predicated region
    $region42: #{tpu_custom_call.1} parent=1 // pred_check
      _
    $region43: #{tpu_custom_call.1} parent=1 // pred_check_branch
      %42 = sbr.rel (0) target = $region45
    $region44: #{tpu_custom_call.1} parent=1 // pred_region
      _
    $region45: #{tpu_custom_call.1} parent=1 // pred_fallthru
      _
    // Predicated region
    $region46: #{tpu_custom_call.1} parent=1 // pred_check
      _
    $region47: #{tpu_custom_call.1} parent=1 // pred_check_branch
      %44 = sbr.rel (0) target = $region49
    $region48: #{tpu_custom_call.1} parent=1 // pred_region
      _
    $region49: #{tpu_custom_call.1} parent=1 // pred_fallthru
      _
    // Predicated region
    $region50: #{tpu_custom_call.1} parent=1 // pred_check
      _
    $region51: #{tpu_custom_call.1} parent=1 // pred_check_branch
      %46 = sbr.rel (0) target = $region53
    $region52: #{tpu_custom_call.1} parent=1 // pred_region
      _
    $region53: #{tpu_custom_call.1} parent=1 // pred_fallthru
      _
    // Predicated region
    $region54: #{tpu_custom_call.1} parent=1 // pred_check
      _
    $region55: #{tpu_custom_call.1} parent=1 // pred_check_branch
      %48 = sbr.rel (0) target = $region57
    $region56: #{tpu_custom_call.1} parent=1 // pred_region
      _
    $region57: #{tpu_custom_call.1} parent=1 // pred_fallthru
      _
    // Predicated region
    $region58: #{tpu_custom_call.1} parent=1 // pred_check
      _
    $region59: #{tpu_custom_call.1} parent=1 // pred_check_branch
      %50 = sbr.rel (0) target = $region61
    $region60: #{tpu_custom_call.1} parent=1 // pred_region
      _
    $region61: #{tpu_custom_call.1} parent=1 // pred_fallthru
      _
    %v51 = vld [vmem:[%s0] sm:$0x7f]
    %v52 = vld [vmem:[%s1] sm:$0xff]
    %v53 = vld [vmem:[%s1 + $0x8] sm:$0x7]
    %v54 = vld [vmem:[%s2] sm:$0x7]
    %v55 = vld [vmem:[%s3] sm:$0x7]
    %57 = vset.pattern.permute.xlu0 0
    %58 = vperm.xlu0 %57, %v55
    %v59 = vpop.permute.xlu0 %58
    %vm61 = vcmask 89088
    %v63 = vsel %vm61, %v54, 0
    %vm65 = vcmask 1042432
    %v67 = vsel %vm65, %v53, 0
    %69 = vmatprep.subr.mxu0 0.0
    %70 = vmatpush1.msra.mxu0 %v52
    %71 = vmatprep.subr.mxu0 0.0
    %72 = vmatpush1.msra.mxu0 %v67
    %73 = vmatprep.subr.mxu0 0.0
    %74 = vmatpush1.msra.mxu0 0.0
    %75 = vmatprep.subr.mxu0 0.0
    %76 = vmatpush1.msra.mxu0 0.0
    %77 = vmatprep.subr.mxu0 0.0
    %78 = vmatpush1.msra.mxu0 0.0
    %79 = vmatprep.subr.mxu0 0.0
    %80 = vmatpush1.msra.mxu0 0.0
    %81 = vmatprep.subr.mxu0 0.0
    %82 = vmatpush1.msra.mxu0 0.0
    %83 = vmatprep.subr.mxu0 0.0
    %84 = vmatpush1.msra.mxu0 0.0
    %85 = vmatprep.subr.mxu0 0.0
    %86 = vmatpush1.msra.mxu0 0.0
    %87 = vmatprep.subr.mxu0 0.0
    %88 = vmatpush1.msra.mxu0 0.0
    %89 = vmatprep.subr.mxu0 0.0
    %90 = vmatpush1.msra.mxu0 0.0
    %91 = vmatprep.subr.mxu0 0.0
    %92 = vmatpush1.msra.mxu0 0.0
    %93 = vmatprep.subr.mxu0 0.0
    %94 = vmatpush1.msra.mxu0 0.0
    %95 = vmatprep.subr.mxu0 0.0
    %96 = vmatpush1.msra.mxu0 0.0
    %97 = vmatprep.subr.mxu0 0.0
    %98 = vmatpush1.msra.mxu0 0.0
    %99 = vmatprep.subr.mxu0 0.0
    %100 = vmatpush1.msra.mxu0 0.0
    %101 = vmatprep.subr.mxu0 0.0
    %102 = vmatpush1.msra.mxu0 0.0
    %103 = vmatprep.subr.mxu0 0.0
    %104 = vmatpush1.msra.mxu0 0.0
    %105 = vmatprep.subr.mxu0 0.0
    %106 = vmatpush1.msra.mxu0 0.0
    %107 = vmatprep.subr.mxu0 0.0
    %108 = vmatpush1.msra.mxu0 0.0
    %109 = vmatprep.subr.mxu0 0.0
    %110 = vmatpush1.msra.mxu0 0.0
    %111 = vmatprep.subr.mxu0 0.0
    %112 = vmatpush1.msra.mxu0 0.0
    %113 = vmatprep.subr.mxu0 0.0
    %114 = vmatpush1.msra.mxu0 0.0
    %115 = vmatprep.subr.mxu0 0.0
    %116 = vmatpush1.msra.mxu0 0.0
    %117 = vmatprep.subr.mxu0 0.0
    %118 = vmatpush1.msra.mxu0 0.0
    %119 = vmatprep.subr.mxu0 0.0
    %120 = vmatpush1.msra.mxu0 0.0
    %121 = vmatprep.subr.mxu0 0.0
    %122 = vmatpush1.msra.mxu0 0.0
    %123 = vmatprep.subr.mxu0 0.0
    %124 = vmatpush1.msra.mxu0 0.0
    %125 = vmatprep.subr.mxu0 0.0
    %126 = vmatpush1.msra.mxu0 0.0
    %127 = vmatprep.subr.mxu0 0.0
    %128 = vmatpush1.msra.mxu0 0.0
    %129 = vmatprep.subr.mxu0 0.0
    %130 = vmatpush1.msra.mxu0 0.0
    %131 = vmatprep.subr.mxu0 0.0
    %132 = vmatpush1.msra.mxu0 0.0
    %133 = vmatprep.mubr.f32.mxu0 0.0
    %134 = vmatmul.mubr.f32.gmra.mrb[0].mxu0 %v63
    %v135 = vpop.f32.mrb[0].mxu0
    %v136 = vadd.f32 %v59, %v135
    %v137 = vpop.f32.mrb[0].mxu0
    %138 = vdwg.mxu0
    %v139 = vmax.f32 %v136, 0.0
    %v140 = vld [vmem:[%s4] sm:$0xff]
    %v141 = vld [vmem:[%s4 + $0x8] sm:$0xff]
    %v142 = vld [vmem:[%s4 + $0x10] sm:$0xff]
    %v143 = vld [vmem:[%s4 + $0x18] sm:$0xff]
    %v144 = vld [vmem:[%s4 + $0x20] sm:$0xff]
    %v145 = vld [vmem:[%s4 + $0x28] sm:$0xff]
    %v146 = vld [vmem:[%s4 + $0x30] sm:$0xff]
    %v147 = vld [vmem:[%s4 + $0x38] sm:$0xff]
    %v148 = vld [vmem:[%s4 + $0x40] sm:$0xff]
    %v149 = vld [vmem:[%s4 + $0x48] sm:$0xff]
    %v150 = vld [vmem:[%s4 + $0x50] sm:$0xff]
    %v151 = vld [vmem:[%s4 + $0x58] sm:$0xff]
    %v152 = vld [vmem:[%s4 + $0x60] sm:$0xff]
    %v153 = vld [vmem:[%s4 + $0x68] sm:$0xff]
    %v154 = vld [vmem:[%s4 + $0x70] sm:$0xff]
    %v155 = vld [vmem:[%s4 + $0x78] sm:$0xff]
    %v156 = vld [vmem:[%s4 + $0x80] sm:$0xff]
    %v157 = vld [vmem:[%s4 + $0x88] sm:$0xff]
    %v158 = vld [vmem:[%s4 + $0x90] sm:$0xff]
    %v159 = vld [vmem:[%s4 + $0x98] sm:$0xff]
    %v160 = vld [vmem:[%s4 + $0xa0] sm:$0xff]
    %v161 = vld [vmem:[%s4 + $0xa8] sm:$0xff]
    %v162 = vld [vmem:[%s4 + $0xb0] sm:$0xff]
    %v163 = vld [vmem:[%s4 + $0xb8] sm:$0xff]
    %v164 = vld [vmem:[%s5] sm:$0xff]
    %v165 = vld [vmem:[%s5 + $0x8] sm:$0xff]
    %v166 = vld [vmem:[%s5 + $0x10] sm:$0xff]
    %v167 = vld [vmem:[%s5 + $0x18] sm:$0xff]
    %v168 = vld [vmem:[%s5 + $0x20] sm:$0xff]
    %v169 = vld [vmem:[%s5 + $0x28] sm:$0xff]
    %v170 = vld [vmem:[%s5 + $0x30] sm:$0xff]
    %v171 = vld [vmem:[%s5 + $0x38] sm:$0xff]
    %v172 = vld [vmem:[%s5 + $0x40] sm:$0xff]
    %v173 = vld [vmem:[%s5 + $0x48] sm:$0xff]
    %v174 = vld [vmem:[%s5 + $0x50] sm:$0xff]
    %v175 = vld [vmem:[%s5 + $0x58] sm:$0xff]
    %v176 = vld [vmem:[%s5 + $0x60] sm:$0xff]
    %v177 = vld [vmem:[%s5 + $0x68] sm:$0xff]
    %v178 = vld [vmem:[%s5 + $0x70] sm:$0xff]
    %v179 = vld [vmem:[%s5 + $0x78] sm:$0xff]
    %v180 = vld [vmem:[%s5 + $0x80] sm:$0xff]
    %v181 = vld [vmem:[%s5 + $0x88] sm:$0xff]
    %v182 = vld [vmem:[%s5 + $0x90] sm:$0xff]
    %v183 = vld [vmem:[%s5 + $0x98] sm:$0xff]
    %v184 = vld [vmem:[%s5 + $0xa0] sm:$0xff]
    %v185 = vld [vmem:[%s5 + $0xa8] sm:$0xff]
    %v186 = vld [vmem:[%s5 + $0xb0] sm:$0xff]
    %v187 = vld [vmem:[%s5 + $0xb8] sm:$0xff]
    %vm188 = vcmask 23552
    %v190 = vsel %vm188, %v164, 0
    %v193 = vsel %vm188, %v165, 0
    %v196 = vsel %vm188, %v166, 0
    %v199 = vsel %vm188, %v167, 0
    %v202 = vsel %vm188, %v168, 0
    %v205 = vsel %vm188, %v169, 0
    %v208 = vsel %vm188, %v170, 0
    %v211 = vsel %vm188, %v171, 0
    %v214 = vsel %vm188, %v172, 0
    %v217 = vsel %vm188, %v173, 0
    %v220 = vsel %vm188, %v174, 0
    %v223 = vsel %vm188, %v175, 0
    %v226 = vsel %vm188, %v176, 0
    %v229 = vsel %vm188, %v177, 0
    %v232 = vsel %vm188, %v178, 0
    %v235 = vsel %vm188, %v179, 0
    %v238 = vsel %vm188, %v180, 0
    %v241 = vsel %vm188, %v181, 0
    %v244 = vsel %vm188, %v182, 0
    %v247 = vsel %vm188, %v183, 0
    %v250 = vsel %vm188, %v184, 0
    %v253 = vsel %vm188, %v185, 0
    %v256 = vsel %vm188, %v186, 0
    %v259 = vsel %vm188, %v187, 0
    %v262 = vsel %vm65, %v139, 0
    %264 = vmatprep.subr.mxu0 0.0
    %265 = vmatpush1.msra.mxu0 %v262
    %266 = vmatprep.subr.mxu0 0.0
    %267 = vmatpush1.msra.mxu0 0.0
    %268 = vmatprep.subr.mxu0 0.0
    %269 = vmatpush1.msra.mxu0 0.0
    %270 = vmatprep.subr.mxu0 0.0
    %271 = vmatpush1.msra.mxu0 0.0
    %272 = vmatprep.subr.mxu0 0.0
    %273 = vmatpush1.msra.mxu0 0.0
    %274 = vmatprep.subr.mxu0 0.0
    %275 = vmatpush1.msra.mxu0 0.0
    %276 = vmatprep.subr.mxu0 0.0
    %277 = vmatpush1.msra.mxu0 0.0
    %278 = vmatprep.subr.mxu0 0.0
    %279 = vmatpush1.msra.mxu0 0.0
    %280 = vmatprep.subr.mxu0 0.0
    %281 = vmatpush1.msra.mxu0 0.0
    %282 = vmatprep.subr.mxu0 0.0
    %283 = vmatpush1.msra.mxu0 0.0
    %284 = vmatprep.subr.mxu0 0.0
    %285 = vmatpush1.msra.mxu0 0.0
    %286 = vmatprep.subr.mxu0 0.0
    %287 = vmatpush1.msra.mxu0 0.0
    %288 = vmatprep.subr.mxu0 0.0
    %289 = vmatpush1.msra.mxu0 0.0
    %290 = vmatprep.subr.mxu0 0.0
    %291 = vmatpush1.msra.mxu0 0.0
    %292 = vmatprep.subr.mxu0 0.0
    %293 = vmatpush1.msra.mxu0 0.0
    %294 = vmatprep.subr.mxu0 0.0
    %295 = vmatpush1.msra.mxu0 0.0
    %296 = vmatprep.subr.mxu0 0.0
    %297 = vmatpush1.msra.mxu0 0.0
    %298 = vmatprep.subr.mxu0 0.0
    %299 = vmatpush1.msra.mxu0 0.0
    %300 = vmatprep.subr.mxu0 0.0
    %301 = vmatpush1.msra.mxu0 0.0
    %302 = vmatprep.subr.mxu0 0.0
    %303 = vmatpush1.msra.mxu0 0.0
    %304 = vmatprep.subr.mxu0 0.0
    %305 = vmatpush1.msra.mxu0 0.0
    %306 = vmatprep.subr.mxu0 0.0
    %307 = vmatpush1.msra.mxu0 0.0
    %308 = vmatprep.subr.mxu0 0.0
    %309 = vmatpush1.msra.mxu0 0.0
    %310 = vmatprep.subr.mxu0 0.0
    %311 = vmatpush1.msra.mxu0 0.0
    %312 = vmatprep.subr.mxu0 0.0
    %313 = vmatpush1.msra.mxu0 0.0
    %314 = vmatprep.subr.mxu0 0.0
    %315 = vmatpush1.msra.mxu0 0.0
    %316 = vmatprep.subr.mxu0 0.0
    %317 = vmatpush1.msra.mxu0 0.0
    %318 = vmatprep.subr.mxu0 0.0
    %319 = vmatpush1.msra.mxu0 0.0
    %320 = vmatprep.subr.mxu0 0.0
    %321 = vmatpush1.msra.mxu0 0.0
    %322 = vmatprep.subr.mxu0 0.0
    %323 = vmatpush1.msra.mxu0 0.0
    %324 = vmatprep.subr.mxu0 0.0
    %325 = vmatpush1.msra.mxu0 0.0
    %326 = vmatprep.subr.mxu0 0.0
    %327 = vmatpush1.msra.mxu0 0.0
    %328 = vmatprep.mubr.f32.mxu0 0.0
    %329 = vmatmul.mubr.f32.gmra.mrb[0].mxu0 %v190
    %v330 = vpop.f32.mrb[0].mxu0
    %v331 = vadd.f32 0.0, %v330
    %v332 = vpop.f32.mrb[0].mxu0
    %333 = vmatprep.mubr.f32.mxu0 0.0
    %334 = vmatmul.mubr.f32.gmra.mrb[0].mxu0 %v193
    %v335 = vpop.f32.mrb[0].mxu0
    %v336 = vadd.f32 0.0, %v335
    %v337 = vpop.f32.mrb[0].mxu0
    %338 = vmatprep.mubr.f32.mxu0 0.0
    %339 = vmatmul.mubr.f32.gmra.mrb[0].mxu0 %v196
    %v340 = vpop.f32.mrb[0].mxu0
    %v341 = vadd.f32 0.0, %v340
    %v342 = vpop.f32.mrb[0].mxu0
    %343 = vmatprep.mubr.f32.mxu0 0.0
    %344 = vmatmul.mubr.f32.gmra.mrb[0].mxu0 %v199
    %v345 = vpop.f32.mrb[0].mxu0
    %v346 = vadd.f32 0.0, %v345
    %v347 = vpop.f32.mrb[0].mxu0
    %348 = vmatprep.mubr.f32.mxu0 0.0
    %349 = vmatmul.mubr.f32.gmra.mrb[0].mxu0 %v202
    %v350 = vpop.f32.mrb[0].mxu0
    %v351 = vadd.f32 0.0, %v350
    %v352 = vpop.f32.mrb[0].mxu0
    %353 = vmatprep.mubr.f32.mxu0 0.0
    %354 = vmatmul.mubr.f32.gmra.mrb[0].mxu0 %v205
    %v355 = vpop.f32.mrb[0].mxu0
    %v356 = vadd.f32 0.0, %v355
    %v357 = vpop.f32.mrb[0].mxu0
    %358 = vmatprep.mubr.f32.mxu0 0.0
    %359 = vmatmul.mubr.f32.gmra.mrb[0].mxu0 %v208
    %v360 = vpop.f32.mrb[0].mxu0
    %v361 = vadd.f32 0.0, %v360
    %v362 = vpop.f32.mrb[0].mxu0
    %363 = vmatprep.mubr.f32.mxu0 0.0
    %364 = vmatmul.mubr.f32.gmra.mrb[0].mxu0 %v211
    %v365 = vpop.f32.mrb[0].mxu0
    %v366 = vadd.f32 0.0, %v365
    %v367 = vpop.f32.mrb[0].mxu0
    %368 = vmatprep.mubr.f32.mxu0 0.0
    %369 = vmatmul.mubr.f32.gmra.mrb[0].mxu0 %v214
    %v370 = vpop.f32.mrb[0].mxu0
    %v371 = vadd.f32 0.0, %v370
    %v372 = vpop.f32.mrb[0].mxu0
    %373 = vmatprep.mubr.f32.mxu0 0.0
    %374 = vmatmul.mubr.f32.gmra.mrb[0].mxu0 %v217
    %v375 = vpop.f32.mrb[0].mxu0
    %v376 = vadd.f32 0.0, %v375
    %v377 = vpop.f32.mrb[0].mxu0
    %378 = vmatprep.mubr.f32.mxu0 0.0
    %379 = vmatmul.mubr.f32.gmra.mrb[0].mxu0 %v220
    %v380 = vpop.f32.mrb[0].mxu0
    %v381 = vadd.f32 0.0, %v380
    %v382 = vpop.f32.mrb[0].mxu0
    %383 = vmatprep.mubr.f32.mxu0 0.0
    %384 = vmatmul.mubr.f32.gmra.mrb[0].mxu0 %v223
    %v385 = vpop.f32.mrb[0].mxu0
    %v386 = vadd.f32 0.0, %v385
    %v387 = vpop.f32.mrb[0].mxu0
    %388 = vmatprep.mubr.f32.mxu0 0.0
    %389 = vmatmul.mubr.f32.gmra.mrb[0].mxu0 %v226
    %v390 = vpop.f32.mrb[0].mxu0
    %v391 = vadd.f32 0.0, %v390
    %v392 = vpop.f32.mrb[0].mxu0
    %393 = vmatprep.mubr.f32.mxu0 0.0
    %394 = vmatmul.mubr.f32.gmra.mrb[0].mxu0 %v229
    %v395 = vpop.f32.mrb[0].mxu0
    %v396 = vadd.f32 0.0, %v395
    %v397 = vpop.f32.mrb[0].mxu0
    %398 = vmatprep.mubr.f32.mxu0 0.0
    %399 = vmatmul.mubr.f32.gmra.mrb[0].mxu0 %v232
    %v400 = vpop.f32.mrb[0].mxu0
    %v401 = vadd.f32 0.0, %v400
    %v402 = vpop.f32.mrb[0].mxu0
    %403 = vmatprep.mubr.f32.mxu0 0.0
    %404 = vmatmul.mubr.f32.gmra.mrb[0].mxu0 %v235
    %v405 = vpop.f32.mrb[0].mxu0
    %v406 = vadd.f32 0.0, %v405
    %v407 = vpop.f32.mrb[0].mxu0
    %408 = vmatprep.mubr.f32.mxu0 0.0
    %409 = vmatmul.mubr.f32.gmra.mrb[0].mxu0 %v238
    %v410 = vpop.f32.mrb[0].mxu0
    %v411 = vadd.f32 0.0, %v410
    %v412 = vpop.f32.mrb[0].mxu0
    %413 = vmatprep.mubr.f32.mxu0 0.0
    %414 = vmatmul.mubr.f32.gmra.mrb[0].mxu0 %v241
    %v415 = vpop.f32.mrb[0].mxu0
    %v416 = vadd.f32 0.0, %v415
    %v417 = vpop.f32.mrb[0].mxu0
    %418 = vmatprep.mubr.f32.mxu0 0.0
    %419 = vmatmul.mubr.f32.gmra.mrb[0].mxu0 %v244
    %v420 = vpop.f32.mrb[0].mxu0
    %v421 = vadd.f32 0.0, %v420
    %v422 = vpop.f32.mrb[0].mxu0
    %423 = vmatprep.mubr.f32.mxu0 0.0
    %424 = vmatmul.mubr.f32.gmra.mrb[0].mxu0 %v247
    %v425 = vpop.f32.mrb[0].mxu0
    %v426 = vadd.f32 0.0, %v425
    %v427 = vpop.f32.mrb[0].mxu0
    %428 = vmatprep.mubr.f32.mxu0 0.0
    %429 = vmatmul.mubr.f32.gmra.mrb[0].mxu0 %v250
    %v430 = vpop.f32.mrb[0].mxu0
    %v431 = vadd.f32 0.0, %v430
    %v432 = vpop.f32.mrb[0].mxu0
    %433 = vmatprep.mubr.f32.mxu0 0.0
    %434 = vmatmul.mubr.f32.gmra.mrb[0].mxu0 %v253
    %v435 = vpop.f32.mrb[0].mxu0
    %v436 = vadd.f32 0.0, %v435
    %v437 = vpop.f32.mrb[0].mxu0
    %438 = vmatprep.mubr.f32.mxu0 0.0
    %439 = vmatmul.mubr.f32.gmra.mrb[0].mxu0 %v256
    %v440 = vpop.f32.mrb[0].mxu0
    %v441 = vadd.f32 0.0, %v440
    %v442 = vpop.f32.mrb[0].mxu0
    %443 = vmatprep.mubr.f32.mxu0 0.0
    %444 = vmatmul.mubr.f32.gmra.mrb[0].mxu0 %v259
    %v445 = vpop.f32.mrb[0].mxu0
    %v446 = vadd.f32 0.0, %v445
    %v447 = vpop.f32.mrb[0].mxu0
    %448 = vdwg.mxu0
    %vm449 = vcmask 56320
    %v451 = vsel %vm449, %v140, 0
    %v454 = vsel %vm449, %v141, 0
    %v457 = vsel %vm449, %v142, 0
    %v460 = vsel %vm449, %v143, 0
    %v463 = vsel %vm449, %v144, 0
    %v466 = vsel %vm449, %v145, 0
    %v469 = vsel %vm449, %v146, 0
    %v472 = vsel %vm449, %v147, 0
    %v475 = vsel %vm449, %v148, 0
    %v478 = vsel %vm449, %v149, 0
    %v481 = vsel %vm449, %v150, 0
    %v484 = vsel %vm449, %v151, 0
    %v487 = vsel %vm449, %v152, 0
    %v490 = vsel %vm449, %v153, 0
    %v493 = vsel %vm449, %v154, 0
    %v496 = vsel %vm449, %v155, 0
    %v499 = vsel %vm449, %v156, 0
    %v502 = vsel %vm449, %v157, 0
    %v505 = vsel %vm449, %v158, 0
    %v508 = vsel %vm449, %v159, 0
    %v511 = vsel %vm449, %v160, 0
    %v514 = vsel %vm449, %v161, 0
    %v517 = vsel %vm449, %v162, 0
    %v520 = vsel %vm449, %v163, 0
    %vm522 = vcmask 1046528
    %v524 = vsel %vm522, %v51, 0
    %526 = vmatprep.subr.mxu0 0.0
    %527 = vmatpush1.msra.mxu0 %v524
    %528 = vmatprep.subr.mxu0 0.0
    %529 = vmatpush1.msra.mxu0 0.0
    %530 = vmatprep.subr.mxu0 0.0
    %531 = vmatpush1.msra.mxu0 0.0
    %532 = vmatprep.subr.mxu0 0.0
    %533 = vmatpush1.msra.mxu0 0.0
    %534 = vmatprep.subr.mxu0 0.0
    %535 = vmatpush1.msra.mxu0 0.0
    %536 = vmatprep.subr.mxu0 0.0
    %537 = vmatpush1.msra.mxu0 0.0
    %538 = vmatprep.subr.mxu0 0.0
    %539 = vmatpush1.msra.mxu0 0.0
    %540 = vmatprep.subr.mxu0 0.0
    %541 = vmatpush1.msra.mxu0 0.0
    %542 = vmatprep.subr.mxu0 0.0
    %543 = vmatpush1.msra.mxu0 0.0
    %544 = vmatprep.subr.mxu0 0.0
    %545 = vmatpush1.msra.mxu0 0.0
    %546 = vmatprep.subr.mxu0 0.0
    %547 = vmatpush1.msra.mxu0 0.0
    %548 = vmatprep.subr.mxu0 0.0
    %549 = vmatpush1.msra.mxu0 0.0
    %550 = vmatprep.subr.mxu0 0.0
    %551 = vmatpush1.msra.mxu0 0.0
    %552 = vmatprep.subr.mxu0 0.0
    %553 = vmatpush1.msra.mxu0 0.0
    %554 = vmatprep.subr.mxu0 0.0
    %555 = vmatpush1.msra.mxu0 0.0
    %556 = vmatprep.subr.mxu0 0.0
    %557 = vmatpush1.msra.mxu0 0.0
    %558 = vmatprep.subr.mxu0 0.0
    %559 = vmatpush1.msra.mxu0 0.0
    %560 = vmatprep.subr.mxu0 0.0
    %561 = vmatpush1.msra.mxu0 0.0
    %562 = vmatprep.subr.mxu0 0.0
    %563 = vmatpush1.msra.mxu0 0.0
    %564 = vmatprep.subr.mxu0 0.0
    %565 = vmatpush1.msra.mxu0 0.0
    %566 = vmatprep.subr.mxu0 0.0
    %567 = vmatpush1.msra.mxu0 0.0
    %568 = vmatprep.subr.mxu0 0.0
    %569 = vmatpush1.msra.mxu0 0.0
    %570 = vmatprep.subr.mxu0 0.0
    %571 = vmatpush1.msra.mxu0 0.0
    %572 = vmatprep.subr.mxu0 0.0
    %573 = vmatpush1.msra.mxu0 0.0
    %574 = vmatprep.subr.mxu0 0.0
    %575 = vmatpush1.msra.mxu0 0.0
    %576 = vmatprep.subr.mxu0 0.0
    %577 = vmatpush1.msra.mxu0 0.0
    %578 = vmatprep.subr.mxu0 0.0
    %579 = vmatpush1.msra.mxu0 0.0
    %580 = vmatprep.subr.mxu0 0.0
    %581 = vmatpush1.msra.mxu0 0.0
    %582 = vmatprep.subr.mxu0 0.0
    %583 = vmatpush1.msra.mxu0 0.0
    %584 = vmatprep.subr.mxu0 0.0
    %585 = vmatpush1.msra.mxu0 0.0
    %586 = vmatprep.subr.mxu0 0.0
    %587 = vmatpush1.msra.mxu0 0.0
    %588 = vmatprep.subr.mxu0 0.0
    %589 = vmatpush1.msra.mxu0 0.0
    %590 = vmatprep.mubr.f32.mxu0 0.0
    %591 = vmatmul.mubr.f32.gmra.mrb[0].mxu0 %v451
    %v592 = vpop.f32.mrb[0].mxu0
    %v593 = vadd.f32 %v331, %v592
    %v594 = vpop.f32.mrb[0].mxu0
    %595 = vmatprep.mubr.f32.mxu0 0.0
    %596 = vmatmul.mubr.f32.gmra.mrb[0].mxu0 %v454
    %v597 = vpop.f32.mrb[0].mxu0
    %v598 = vadd.f32 %v336, %v597
    %v599 = vpop.f32.mrb[0].mxu0
    %600 = vmatprep.mubr.f32.mxu0 0.0
    %601 = vmatmul.mubr.f32.gmra.mrb[0].mxu0 %v457
    %v602 = vpop.f32.mrb[0].mxu0
    %v603 = vadd.f32 %v341, %v602
    %v604 = vpop.f32.mrb[0].mxu0
    %605 = vmatprep.mubr.f32.mxu0 0.0
    %606 = vmatmul.mubr.f32.gmra.mrb[0].mxu0 %v460
    %v607 = vpop.f32.mrb[0].mxu0
    %v608 = vadd.f32 %v346, %v607
    %v609 = vpop.f32.mrb[0].mxu0
    %610 = vmatprep.mubr.f32.mxu0 0.0
    %611 = vmatmul.mubr.f32.gmra.mrb[0].mxu0 %v463
    %v612 = vpop.f32.mrb[0].mxu0
    %v613 = vadd.f32 %v351, %v612
    %v614 = vpop.f32.mrb[0].mxu0
    %615 = vmatprep.mubr.f32.mxu0 0.0
    %616 = vmatmul.mubr.f32.gmra.mrb[0].mxu0 %v466
    %v617 = vpop.f32.mrb[0].mxu0
    %v618 = vadd.f32 %v356, %v617
    %v619 = vpop.f32.mrb[0].mxu0
    %620 = vmatprep.mubr.f32.mxu0 0.0
    %621 = vmatmul.mubr.f32.gmra.mrb[0].mxu0 %v469
    %v622 = vpop.f32.mrb[0].mxu0
    %v623 = vadd.f32 %v361, %v622
    %v624 = vpop.f32.mrb[0].mxu0
    %625 = vmatprep.mubr.f32.mxu0 0.0
    %626 = vmatmul.mubr.f32.gmra.mrb[0].mxu0 %v472
    %v627 = vpop.f32.mrb[0].mxu0
    %v628 = vadd.f32 %v366, %v627
    %v629 = vpop.f32.mrb[0].mxu0
    %630 = vmatprep.mubr.f32.mxu0 0.0
    %631 = vmatmul.mubr.f32.gmra.mrb[0].mxu0 %v475
    %v632 = vpop.f32.mrb[0].mxu0
    %v633 = vadd.f32 %v371, %v632
    %v634 = vpop.f32.mrb[0].mxu0
    %635 = vmatprep.mubr.f32.mxu0 0.0
    %636 = vmatmul.mubr.f32.gmra.mrb[0].mxu0 %v478
    %v637 = vpop.f32.mrb[0].mxu0
    %v638 = vadd.f32 %v376, %v637
    %v639 = vpop.f32.mrb[0].mxu0
    %640 = vmatprep.mubr.f32.mxu0 0.0
    %641 = vmatmul.mubr.f32.gmra.mrb[0].mxu0 %v481
    %v642 = vpop.f32.mrb[0].mxu0
    %v643 = vadd.f32 %v381, %v642
    %v644 = vpop.f32.mrb[0].mxu0
    %645 = vmatprep.mubr.f32.mxu0 0.0
    %646 = vmatmul.mubr.f32.gmra.mrb[0].mxu0 %v484
    %v647 = vpop.f32.mrb[0].mxu0
    %v648 = vadd.f32 %v386, %v647
    %v649 = vpop.f32.mrb[0].mxu0
    %650 = vmatprep.mubr.f32.mxu0 0.0
    %651 = vmatmul.mubr.f32.gmra.mrb[0].mxu0 %v487
    %v652 = vpop.f32.mrb[0].mxu0
    %v653 = vadd.f32 %v391, %v652
    %v654 = vpop.f32.mrb[0].mxu0
    %655 = vmatprep.mubr.f32.mxu0 0.0
    %656 = vmatmul.mubr.f32.gmra.mrb[0].mxu0 %v490
    %v657 = vpop.f32.mrb[0].mxu0
    %v658 = vadd.f32 %v396, %v657
    %v659 = vpop.f32.mrb[0].mxu0
    %660 = vmatprep.mubr.f32.mxu0 0.0
    %661 = vmatmul.mubr.f32.gmra.mrb[0].mxu0 %v493
    %v662 = vpop.f32.mrb[0].mxu0
    %v663 = vadd.f32 %v401, %v662
    %v664 = vpop.f32.mrb[0].mxu0
    %665 = vmatprep.mubr.f32.mxu0 0.0
    %666 = vmatmul.mubr.f32.gmra.mrb[0].mxu0 %v496
    %v667 = vpop.f32.mrb[0].mxu0
    %v668 = vadd.f32 %v406, %v667
    %v669 = vpop.f32.mrb[0].mxu0
    %670 = vmatprep.mubr.f32.mxu0 0.0
    %671 = vmatmul.mubr.f32.gmra.mrb[0].mxu0 %v499
    %v672 = vpop.f32.mrb[0].mxu0
    %v673 = vadd.f32 %v411, %v672
    %v674 = vpop.f32.mrb[0].mxu0
    %675 = vmatprep.mubr.f32.mxu0 0.0
    %676 = vmatmul.mubr.f32.gmra.mrb[0].mxu0 %v502
    %v677 = vpop.f32.mrb[0].mxu0
    %v678 = vadd.f32 %v416, %v677
    %v679 = vpop.f32.mrb[0].mxu0
    %680 = vmatprep.mubr.f32.mxu0 0.0
    %681 = vmatmul.mubr.f32.gmra.mrb[0].mxu0 %v505
    %v682 = vpop.f32.mrb[0].mxu0
    %v683 = vadd.f32 %v421, %v682
    %v684 = vpop.f32.mrb[0].mxu0
    %685 = vmatprep.mubr.f32.mxu0 0.0
    %686 = vmatmul.mubr.f32.gmra.mrb[0].mxu0 %v508
    %v687 = vpop.f32.mrb[0].mxu0
    %v688 = vadd.f32 %v426, %v687
    %v689 = vpop.f32.mrb[0].mxu0
    %690 = vmatprep.mubr.f32.mxu0 0.0
    %691 = vmatmul.mubr.f32.gmra.mrb[0].mxu0 %v511
    %v692 = vpop.f32.mrb[0].mxu0
    %v693 = vadd.f32 %v431, %v692
    %v694 = vpop.f32.mrb[0].mxu0
    %695 = vmatprep.mubr.f32.mxu0 0.0
    %696 = vmatmul.mubr.f32.gmra.mrb[0].mxu0 %v514
    %v697 = vpop.f32.mrb[0].mxu0
    %v698 = vadd.f32 %v436, %v697
    %v699 = vpop.f32.mrb[0].mxu0
    %700 = vmatprep.mubr.f32.mxu0 0.0
    %701 = vmatmul.mubr.f32.gmra.mrb[0].mxu0 %v517
    %v702 = vpop.f32.mrb[0].mxu0
    %v703 = vadd.f32 %v441, %v702
    %v704 = vpop.f32.mrb[0].mxu0
    %705 = vmatprep.mubr.f32.mxu0 0.0
    %706 = vmatmul.mubr.f32.gmra.mrb[0].mxu0 %v520
    %v707 = vpop.f32.mrb[0].mxu0
    %v708 = vadd.f32 %v446, %v707
    %v709 = vpop.f32.mrb[0].mxu0
    %710 = vdwg.mxu0
    %v711 = vld [vmem:[%s6] sm:$0xff]
    %v712 = vld [vmem:[%s6 + $0x8] sm:$0xff]
    %v713 = vld [vmem:[%s6 + $0x10] sm:$0xff]
    %v714 = vld [vmem:[%s6 + $0x18] sm:$0xff]
    %v715 = vld [vmem:[%s6 + $0x20] sm:$0xff]
    %v716 = vld [vmem:[%s6 + $0x28] sm:$0xff]
    %v717 = vld [vmem:[%s6 + $0x30] sm:$0xff]
    %v718 = vld [vmem:[%s6 + $0x38] sm:$0xff]
    %v719 = vld [vmem:[%s6 + $0x40] sm:$0xff]
    %v720 = vld [vmem:[%s6 + $0x48] sm:$0xff]
    %v721 = vld [vmem:[%s6 + $0x50] sm:$0xff]
    %v722 = vld [vmem:[%s6 + $0x58] sm:$0xff]
    %v723 = vld [vmem:[%s6 + $0x60] sm:$0xff]
    %v724 = vld [vmem:[%s6 + $0x68] sm:$0xff]
    %v725 = vld [vmem:[%s6 + $0x70] sm:$0xff]
    %v726 = vld [vmem:[%s6 + $0x78] sm:$0xff]
    %v727 = vld [vmem:[%s6 + $0x80] sm:$0xff]
    %v728 = vld [vmem:[%s6 + $0x88] sm:$0xff]
    %v729 = vld [vmem:[%s6 + $0x90] sm:$0xff]
    %v730 = vld [vmem:[%s6 + $0x98] sm:$0xff]
    %v731 = vld [vmem:[%s6 + $0xa0] sm:$0xff]
    %v732 = vld [vmem:[%s6 + $0xa8] sm:$0xff]
    %v733 = vld [vmem:[%s6 + $0xb0] sm:$0xff]
    %v734 = vld [vmem:[%s6 + $0xb8] sm:$0xff]
    %736 = vset.pattern.permute.xlu0 0
    %737 = vperm.xlu0 %736, %v711
    %v738 = vpop.permute.xlu0 %737
    %741 = vset.pattern.permute.xlu0 0
    %742 = vperm.xlu0 %741, %v712
    %v743 = vpop.permute.xlu0 %742
    %746 = vset.pattern.permute.xlu0 0
    %747 = vperm.xlu0 %746, %v713
    %v748 = vpop.permute.xlu0 %747
    %751 = vset.pattern.permute.xlu0 0
    %752 = vperm.xlu0 %751, %v714
    %v753 = vpop.permute.xlu0 %752
    %756 = vset.pattern.permute.xlu0 0
    %757 = vperm.xlu0 %756, %v715
    %v758 = vpop.permute.xlu0 %757
    %761 = vset.pattern.permute.xlu0 0
    %762 = vperm.xlu0 %761, %v716
    %v763 = vpop.permute.xlu0 %762
    %766 = vset.pattern.permute.xlu0 0
    %767 = vperm.xlu0 %766, %v717
    %v768 = vpop.permute.xlu0 %767
    %771 = vset.pattern.permute.xlu0 0
    %772 = vperm.xlu0 %771, %v718
    %v773 = vpop.permute.xlu0 %772
    %776 = vset.pattern.permute.xlu0 0
    %777 = vperm.xlu0 %776, %v719
    %v778 = vpop.permute.xlu0 %777
    %781 = vset.pattern.permute.xlu0 0
    %782 = vperm.xlu0 %781, %v720
    %v783 = vpop.permute.xlu0 %782
    %786 = vset.pattern.permute.xlu0 0
    %787 = vperm.xlu0 %786, %v721
    %v788 = vpop.permute.xlu0 %787
    %791 = vset.pattern.permute.xlu0 0
    %792 = vperm.xlu0 %791, %v722
    %v793 = vpop.permute.xlu0 %792
    %796 = vset.pattern.permute.xlu0 0
    %797 = vperm.xlu0 %796, %v723
    %v798 = vpop.permute.xlu0 %797
    %801 = vset.pattern.permute.xlu0 0
    %802 = vperm.xlu0 %801, %v724
    %v803 = vpop.permute.xlu0 %802
    %806 = vset.pattern.permute.xlu0 0
    %807 = vperm.xlu0 %806, %v725
    %v808 = vpop.permute.xlu0 %807
    %811 = vset.pattern.permute.xlu0 0
    %812 = vperm.xlu0 %811, %v726
    %v813 = vpop.permute.xlu0 %812
    %816 = vset.pattern.permute.xlu0 0
    %817 = vperm.xlu0 %816, %v727
    %v818 = vpop.permute.xlu0 %817
    %821 = vset.pattern.permute.xlu0 0
    %822 = vperm.xlu0 %821, %v728
    %v823 = vpop.permute.xlu0 %822
    %826 = vset.pattern.permute.xlu0 0
    %827 = vperm.xlu0 %826, %v729
    %v828 = vpop.permute.xlu0 %827
    %831 = vset.pattern.permute.xlu0 0
    %832 = vperm.xlu0 %831, %v730
    %v833 = vpop.permute.xlu0 %832
    %836 = vset.pattern.permute.xlu0 0
    %837 = vperm.xlu0 %836, %v731
    %v838 = vpop.permute.xlu0 %837
    %841 = vset.pattern.permute.xlu0 0
    %842 = vperm.xlu0 %841, %v732
    %v843 = vpop.permute.xlu0 %842
    %846 = vset.pattern.permute.xlu0 0
    %847 = vperm.xlu0 %846, %v733
    %v848 = vpop.permute.xlu0 %847
    %851 = vset.pattern.permute.xlu0 0
    %852 = vperm.xlu0 %851, %v734
    %v853 = vpop.permute.xlu0 %852
    %v855 = vadd.f32 %v593, %v738
    %v856 = vadd.f32 %v598, %v743
    %v857 = vadd.f32 %v603, %v748
    %v858 = vadd.f32 %v608, %v753
    %v859 = vadd.f32 %v613, %v758
    %v860 = vadd.f32 %v618, %v763
    %v861 = vadd.f32 %v623, %v768
    %v862 = vadd.f32 %v628, %v773
    %v863 = vadd.f32 %v633, %v778
    %v864 = vadd.f32 %v638, %v783
    %v865 = vadd.f32 %v643, %v788
    %v866 = vadd.f32 %v648, %v793
    %v867 = vadd.f32 %v653, %v798
    %v868 = vadd.f32 %v658, %v803
    %v869 = vadd.f32 %v663, %v808
    %v870 = vadd.f32 %v668, %v813
    %v871 = vadd.f32 %v673, %v818
    %v872 = vadd.f32 %v678, %v823
    %v873 = vadd.f32 %v683, %v828
    %v874 = vadd.f32 %v688, %v833
    %v875 = vadd.f32 %v693, %v838
    %v876 = vadd.f32 %v698, %v843
    %v877 = vadd.f32 %v703, %v848
    %v878 = vadd.f32 %v708, %v853
    %v879 = vxor.u32 %v855, 2147483648
    %v880 = vxor.u32 %v856, 2147483648
    %v881 = vxor.u32 %v857, 2147483648
    %v882 = vxor.u32 %v858, 2147483648
    %v883 = vxor.u32 %v859, 2147483648
    %v884 = vxor.u32 %v860, 2147483648
    %v885 = vxor.u32 %v861, 2147483648
    %v886 = vxor.u32 %v862, 2147483648
    %v887 = vmul.f32 %v879, 1.442695
    %v888 = vpow.pop %v887
    %v889 = vmul.f32 %v880, 1.442695
    %v890 = vpow.pop %v889
    %v891 = vmul.f32 %v881, 1.442695
    %v892 = vpow.pop %v891
    %v893 = vmul.f32 %v882, 1.442695
    %v894 = vpow.pop %v893
    %v895 = vmul.f32 %v883, 1.442695
    %v896 = vpow.pop %v895
    %v897 = vmul.f32 %v884, 1.442695
    %v898 = vpow.pop %v897
    %v899 = vmul.f32 %v885, 1.442695
    %v900 = vpow.pop %v899
    %v901 = vmul.f32 %v886, 1.442695
    %v902 = vpow.pop %v901
    %v903 = vadd.f32 %v888, 1.0
    %v904 = vadd.f32 %v890, 1.0
    %v905 = vadd.f32 %v892, 1.0
    %v906 = vadd.f32 %v894, 1.0
    %v907 = vadd.f32 %v896, 1.0
    %v908 = vadd.f32 %v898, 1.0
    %v909 = vadd.f32 %v900, 1.0
    %v910 = vadd.f32 %v902, 1.0
    %v911 = vrcp.pop %v903
    %v912 = vmul.f32 1.0, %v911
    %v913 = vrcp.pop %v904
    %v914 = vmul.f32 1.0, %v913
    %v915 = vrcp.pop %v905
    %v916 = vmul.f32 1.0, %v915
    %v917 = vrcp.pop %v906
    %v918 = vmul.f32 1.0, %v917
    %v919 = vrcp.pop %v907
    %v920 = vmul.f32 1.0, %v919
    %v921 = vrcp.pop %v908
    %v922 = vmul.f32 1.0, %v921
    %v923 = vrcp.pop %v909
    %v924 = vmul.f32 1.0, %v923
    %v925 = vrcp.pop %v910
    %v926 = vmul.f32 1.0, %v925
    %v927 = vld [vmem:[%s7] sm:$0xff]
    %v928 = vld [vmem:[%s7 + $0x8] sm:$0xff]
    %v929 = vld [vmem:[%s7 + $0x10] sm:$0xff]
    %v930 = vld [vmem:[%s7 + $0x18] sm:$0xff]
    %v931 = vld [vmem:[%s7 + $0x20] sm:$0xff]
    %v932 = vld [vmem:[%s7 + $0x28] sm:$0xff]
    %v933 = vld [vmem:[%s7 + $0x30] sm:$0xff]
    %v934 = vld [vmem:[%s7 + $0x38] sm:$0xff]
    %936 = vset.pattern.permute.xlu0 0
    %937 = vperm.xlu0 %936, %v927
    %v938 = vpop.permute.xlu0 %937
    %941 = vset.pattern.permute.xlu0 0
    %942 = vperm.xlu0 %941, %v928
    %v943 = vpop.permute.xlu0 %942
    %946 = vset.pattern.permute.xlu0 0
    %947 = vperm.xlu0 %946, %v929
    %v948 = vpop.permute.xlu0 %947
    %951 = vset.pattern.permute.xlu0 0
    %952 = vperm.xlu0 %951, %v930
    %v953 = vpop.permute.xlu0 %952
    %956 = vset.pattern.permute.xlu0 0
    %957 = vperm.xlu0 %956, %v931
    %v958 = vpop.permute.xlu0 %957
    %961 = vset.pattern.permute.xlu0 0
    %962 = vperm.xlu0 %961, %v932
    %v963 = vpop.permute.xlu0 %962
    %966 = vset.pattern.permute.xlu0 0
    %967 = vperm.xlu0 %966, %v933
    %v968 = vpop.permute.xlu0 %967
    %971 = vset.pattern.permute.xlu0 0
    %972 = vperm.xlu0 %971, %v934
    %v973 = vpop.permute.xlu0 %972
    %v975 = vmul.f32 %v912, %v938
    %v976 = vmul.f32 %v914, %v943
    %v977 = vmul.f32 %v916, %v948
    %v978 = vmul.f32 %v918, %v953
    %v979 = vmul.f32 %v920, %v958
    %v980 = vmul.f32 %v922, %v963
    %v981 = vmul.f32 %v924, %v968
    %v982 = vmul.f32 %v926, %v973
    %v983 = vadd.f32 %v871, %v975
    %v984 = vadd.f32 %v872, %v976
    %v985 = vadd.f32 %v873, %v977
    %v986 = vadd.f32 %v874, %v978
    %v987 = vadd.f32 %v875, %v979
    %v988 = vadd.f32 %v876, %v980
    %v989 = vadd.f32 %v877, %v981
    %v990 = vadd.f32 %v878, %v982
    %v991 = vtanh.pop %v983
    %v992 = vtanh.pop %v984
    %v993 = vtanh.pop %v985
    %v994 = vtanh.pop %v986
    %v995 = vtanh.pop %v987
    %v996 = vtanh.pop %v988
    %v997 = vtanh.pop %v989
    %v998 = vtanh.pop %v990
    %v999 = vsub.f32 0.0, %v863
    %v1000 = vsub.f32 0.0, %v864
    %v1001 = vsub.f32 0.0, %v865
    %v1002 = vsub.f32 0.0, %v866
    %v1003 = vsub.f32 0.0, %v867
    %v1004 = vsub.f32 0.0, %v868
    %v1005 = vsub.f32 0.0, %v869
    %v1006 = vsub.f32 0.0, %v870
    %v1007 = vxor.u32 %v999, 2147483648
    %v1008 = vxor.u32 %v1000, 2147483648
    %v1009 = vxor.u32 %v1001, 2147483648
    %v1010 = vxor.u32 %v1002, 2147483648
    %v1011 = vxor.u32 %v1003, 2147483648
    %v1012 = vxor.u32 %v1004, 2147483648
    %v1013 = vxor.u32 %v1005, 2147483648
    %v1014 = vxor.u32 %v1006, 2147483648
    %v1015 = vmul.f32 %v1007, 1.442695
    %v1016 = vpow.pop %v1015
    %v1017 = vmul.f32 %v1008, 1.442695
    %v1018 = vpow.pop %v1017
    %v1019 = vmul.f32 %v1009, 1.442695
    %v1020 = vpow.pop %v1019
    %v1021 = vmul.f32 %v1010, 1.442695
    %v1022 = vpow.pop %v1021
    %v1023 = vmul.f32 %v1011, 1.442695
    %v1024 = vpow.pop %v1023
    %v1025 = vmul.f32 %v1012, 1.442695
    %v1026 = vpow.pop %v1025
    %v1027 = vmul.f32 %v1013, 1.442695
    %v1028 = vpow.pop %v1027
    %v1029 = vmul.f32 %v1014, 1.442695
    %v1030 = vpow.pop %v1029
    %v1031 = vadd.f32 %v1016, 1.0
    %v1032 = vadd.f32 %v1018, 1.0
    %v1033 = vadd.f32 %v1020, 1.0
    %v1034 = vadd.f32 %v1022, 1.0
    %v1035 = vadd.f32 %v1024, 1.0
    %v1036 = vadd.f32 %v1026, 1.0
    %v1037 = vadd.f32 %v1028, 1.0
    %v1038 = vadd.f32 %v1030, 1.0
    %v1039 = vrcp.pop %v1031
    %v1040 = vmul.f32 1.0, %v1039
    %v1041 = vrcp.pop %v1032
    %v1042 = vmul.f32 1.0, %v1041
    %v1043 = vrcp.pop %v1033
    %v1044 = vmul.f32 1.0, %v1043
    %v1045 = vrcp.pop %v1034
    %v1046 = vmul.f32 1.0, %v1045
    %v1047 = vrcp.pop %v1035
    %v1048 = vmul.f32 1.0, %v1047
    %v1049 = vrcp.pop %v1036
    %v1050 = vmul.f32 1.0, %v1049
    %v1051 = vrcp.pop %v1037
    %v1052 = vmul.f32 1.0, %v1051
    %v1053 = vrcp.pop %v1038
    %v1054 = vmul.f32 1.0, %v1053
    %v1055 = vmul.f32 %v1040, %v991
    %v1056 = vmul.f32 %v1042, %v992
    %v1057 = vmul.f32 %v1044, %v993
    %v1058 = vmul.f32 %v1046, %v994
    %v1059 = vmul.f32 %v1048, %v995
    %v1060 = vmul.f32 %v1050, %v996
    %v1061 = vmul.f32 %v1052, %v997
    %v1062 = vmul.f32 %v1054, %v998
    %v1063 = vld [vmem:[%s8] sm:$0xff]
    %v1064 = vld [vmem:[%s8 + $0x8] sm:$0xff]
    %v1065 = vld [vmem:[%s8 + $0x10] sm:$0xff]
    %v1066 = vld [vmem:[%s8 + $0x18] sm:$0xff]
    %v1067 = vld [vmem:[%s8 + $0x20] sm:$0xff]
    %v1068 = vld [vmem:[%s8 + $0x28] sm:$0xff]
    %v1069 = vld [vmem:[%s8 + $0x30] sm:$0xff]
    %v1070 = vld [vmem:[%s8 + $0x38] sm:$0xff]
    %v1071 = vld [vmem:[%s8 + $0x40] sm:$0xff]
    %v1072 = vld [vmem:[%s8 + $0x48] sm:$0xff]
    %v1073 = vld [vmem:[%s8 + $0x50] sm:$0xff]
    %v1074 = vld [vmem:[%s8 + $0x58] sm:$0xff]
    %v1075 = vld [vmem:[%s8 + $0x60] sm:$0xff]
    %v1076 = vld [vmem:[%s8 + $0x68] sm:$0xff]
    %v1077 = vld [vmem:[%s8 + $0x70] sm:$0xff]
    %v1078 = vld [vmem:[%s8 + $0x78] sm:$0xff]
    %v1079 = vld [vmem:[%s8 + $0x80] sm:$0xff]
    %v1080 = vld [vmem:[%s8 + $0x88] sm:$0xff]
    %v1081 = vld [vmem:[%s8 + $0x90] sm:$0xff]
    %v1082 = vld [vmem:[%s8 + $0x98] sm:$0xff]
    %v1083 = vld [vmem:[%s8 + $0xa0] sm:$0xff]
    %v1084 = vld [vmem:[%s8 + $0xa8] sm:$0xff]
    %v1085 = vld [vmem:[%s8 + $0xb0] sm:$0xff]
    %v1086 = vld [vmem:[%s8 + $0xb8] sm:$0xff]
    %v1087 = vld [vmem:[%s9] sm:$0xff]
    %v1088 = vld [vmem:[%s9 + $0x8] sm:$0xff]
    %v1089 = vld [vmem:[%s9 + $0x10] sm:$0xff]
    %v1090 = vld [vmem:[%s9 + $0x18] sm:$0xff]
    %v1091 = vld [vmem:[%s9 + $0x20] sm:$0xff]
    %v1092 = vld [vmem:[%s9 + $0x28] sm:$0xff]
    %v1093 = vld [vmem:[%s9 + $0x30] sm:$0xff]
    %v1094 = vld [vmem:[%s9 + $0x38] sm:$0xff]
    %v1095 = vld [vmem:[%s9 + $0x40] sm:$0xff]
    %v1096 = vld [vmem:[%s9 + $0x48] sm:$0xff]
    %v1097 = vld [vmem:[%s9 + $0x50] sm:$0xff]
    %v1098 = vld [vmem:[%s9 + $0x58] sm:$0xff]
    %v1099 = vld [vmem:[%s9 + $0x60] sm:$0xff]
    %v1100 = vld [vmem:[%s9 + $0x68] sm:$0xff]
    %v1101 = vld [vmem:[%s9 + $0x70] sm:$0xff]
    %v1102 = vld [vmem:[%s9 + $0x78] sm:$0xff]
    %v1103 = vld [vmem:[%s9 + $0x80] sm:$0xff]
    %v1104 = vld [vmem:[%s9 + $0x88] sm:$0xff]
    %v1105 = vld [vmem:[%s9 + $0x90] sm:$0xff]
    %v1106 = vld [vmem:[%s9 + $0x98] sm:$0xff]
    %v1107 = vld [vmem:[%s9 + $0xa0] sm:$0xff]
    %v1108 = vld [vmem:[%s9 + $0xa8] sm:$0xff]
    %v1109 = vld [vmem:[%s9 + $0xb0] sm:$0xff]
    %v1110 = vld [vmem:[%s9 + $0xb8] sm:$0xff]
    %1112 = vset.pattern.permute.xlu0 0
    %1113 = vperm.xlu0 %1112, %v1087
    %v1114 = vpop.permute.xlu0 %1113
    %1117 = vset.pattern.permute.xlu0 0
    %1118 = vperm.xlu0 %1117, %v1088
    %v1119 = vpop.permute.xlu0 %1118
    %1122 = vset.pattern.permute.xlu0 0
    %1123 = vperm.xlu0 %1122, %v1089
    %v1124 = vpop.permute.xlu0 %1123
    %1127 = vset.pattern.permute.xlu0 0
    %1128 = vperm.xlu0 %1127, %v1090
    %v1129 = vpop.permute.xlu0 %1128
    %1132 = vset.pattern.permute.xlu0 0
    %1133 = vperm.xlu0 %1132, %v1091
    %v1134 = vpop.permute.xlu0 %1133
    %1137 = vset.pattern.permute.xlu0 0
    %1138 = vperm.xlu0 %1137, %v1092
    %v1139 = vpop.permute.xlu0 %1138
    %1142 = vset.pattern.permute.xlu0 0
    %1143 = vperm.xlu0 %1142, %v1093
    %v1144 = vpop.permute.xlu0 %1143
    %1147 = vset.pattern.permute.xlu0 0
    %1148 = vperm.xlu0 %1147, %v1094
    %v1149 = vpop.permute.xlu0 %1148
    %1152 = vset.pattern.permute.xlu0 0
    %1153 = vperm.xlu0 %1152, %v1095
    %v1154 = vpop.permute.xlu0 %1153
    %1157 = vset.pattern.permute.xlu0 0
    %1158 = vperm.xlu0 %1157, %v1096
    %v1159 = vpop.permute.xlu0 %1158
    %1162 = vset.pattern.permute.xlu0 0
    %1163 = vperm.xlu0 %1162, %v1097
    %v1164 = vpop.permute.xlu0 %1163
    %1167 = vset.pattern.permute.xlu0 0
    %1168 = vperm.xlu0 %1167, %v1098
    %v1169 = vpop.permute.xlu0 %1168
    %1172 = vset.pattern.permute.xlu0 0
    %1173 = vperm.xlu0 %1172, %v1099
    %v1174 = vpop.permute.xlu0 %1173
    %1177 = vset.pattern.permute.xlu0 0
    %1178 = vperm.xlu0 %1177, %v1100
    %v1179 = vpop.permute.xlu0 %1178
    %1182 = vset.pattern.permute.xlu0 0
    %1183 = vperm.xlu0 %1182, %v1101
    %v1184 = vpop.permute.xlu0 %1183
    %1187 = vset.pattern.permute.xlu0 0
    %1188 = vperm.xlu0 %1187, %v1102
    %v1189 = vpop.permute.xlu0 %1188
    %1192 = vset.pattern.permute.xlu0 0
    %1193 = vperm.xlu0 %1192, %v1103
    %v1194 = vpop.permute.xlu0 %1193
    %1197 = vset.pattern.permute.xlu0 0
    %1198 = vperm.xlu0 %1197, %v1104
    %v1199 = vpop.permute.xlu0 %1198
    %1202 = vset.pattern.permute.xlu0 0
    %1203 = vperm.xlu0 %1202, %v1105
    %v1204 = vpop.permute.xlu0 %1203
    %1207 = vset.pattern.permute.xlu0 0
    %1208 = vperm.xlu0 %1207, %v1106
    %v1209 = vpop.permute.xlu0 %1208
    %1212 = vset.pattern.permute.xlu0 0
    %1213 = vperm.xlu0 %1212, %v1107
    %v1214 = vpop.permute.xlu0 %1213
    %1217 = vset.pattern.permute.xlu0 0
    %1218 = vperm.xlu0 %1217, %v1108
    %v1219 = vpop.permute.xlu0 %1218
    %1222 = vset.pattern.permute.xlu0 0
    %1223 = vperm.xlu0 %1222, %v1109
    %v1224 = vpop.permute.xlu0 %1223
    %1227 = vset.pattern.permute.xlu0 0
    %1228 = vperm.xlu0 %1227, %v1110
    %v1229 = vpop.permute.xlu0 %1228
    %vm1231 = vcmask 523264
    %v1233 = vsel %vm1231, %v1063, 0
    %v1236 = vsel %vm1231, %v1064, 0
    %v1239 = vsel %vm1231, %v1065, 0
    %v1242 = vsel %vm1231, %v1066, 0
    %v1245 = vsel %vm1231, %v1067, 0
    %v1248 = vsel %vm1231, %v1068, 0
    %v1251 = vsel %vm1231, %v1069, 0
    %v1254 = vsel %vm1231, %v1070, 0
    %v1257 = vsel %vm1231, %v1071, 0
    %v1260 = vsel %vm1231, %v1072, 0
    %v1263 = vsel %vm1231, %v1073, 0
    %v1266 = vsel %vm1231, %v1074, 0
    %v1269 = vsel %vm1231, %v1075, 0
    %v1272 = vsel %vm1231, %v1076, 0
    %v1275 = vsel %vm1231, %v1077, 0
    %v1278 = vsel %vm1231, %v1078, 0
    %v1281 = vsel %vm1231, %v1079, 0
    %v1284 = vsel %vm1231, %v1080, 0
    %v1287 = vsel %vm1231, %v1081, 0
    %v1290 = vsel %vm1231, %v1082, 0
    %v1293 = vsel %vm1231, %v1083, 0
    %v1296 = vsel %vm1231, %v1084, 0
    %v1299 = vsel %vm1231, %v1085, 0
    %v1302 = vsel %vm1231, %v1086, 0
    %1304 = vmatprep.subr.mxu0 0.0
    %1305 = vmatpush1.msra.mxu0 %v1055
    %1306 = vmatprep.subr.mxu0 0.0
    %1307 = vmatpush1.msra.mxu0 %v1056
    %1308 = vmatprep.subr.mxu0 0.0
    %1309 = vmatpush1.msra.mxu0 %v1057
    %1310 = vmatprep.subr.mxu0 0.0
    %1311 = vmatpush1.msra.mxu0 %v1058
    %1312 = vmatprep.subr.mxu0 0.0
    %1313 = vmatpush1.msra.mxu0 %v1059
    %1314 = vmatprep.subr.mxu0 0.0
    %1315 = vmatpush1.msra.mxu0 %v1060
    %1316 = vmatprep.subr.mxu0 0.0
    %1317 = vmatpush1.msra.mxu0 %v1061
    %1318 = vmatprep.subr.mxu0 0.0
    %1319 = vmatpush1.msra.mxu0 %v1062
    %1320 = vmatprep.subr.mxu0 0.0
    %1321 = vmatpush1.msra.mxu0 0.0
    %1322 = vmatprep.subr.mxu0 0.0
    %1323 = vmatpush1.msra.mxu0 0.0
    %1324 = vmatprep.subr.mxu0 0.0
    %1325 = vmatpush1.msra.mxu0 0.0
    %1326 = vmatprep.subr.mxu0 0.0
    %1327 = vmatpush1.msra.mxu0 0.0
    %1328 = vmatprep.subr.mxu0 0.0
    %1329 = vmatpush1.msra.mxu0 0.0
    %1330 = vmatprep.subr.mxu0 0.0
    %1331 = vmatpush1.msra.mxu0 0.0
    %1332 = vmatprep.subr.mxu0 0.0
    %1333 = vmatpush1.msra.mxu0 0.0
    %1334 = vmatprep.subr.mxu0 0.0
    %1335 = vmatpush1.msra.mxu0 0.0
    %1336 = vmatprep.subr.mxu0 0.0
    %1337 = vmatpush1.msra.mxu0 0.0
    %1338 = vmatprep.subr.mxu0 0.0
    %1339 = vmatpush1.msra.mxu0 0.0
    %1340 = vmatprep.subr.mxu0 0.0
    %1341 = vmatpush1.msra.mxu0 0.0
    %1342 = vmatprep.subr.mxu0 0.0
    %1343 = vmatpush1.msra.mxu0 0.0
    %1344 = vmatprep.subr.mxu0 0.0
    %1345 = vmatpush1.msra.mxu0 0.0
    %1346 = vmatprep.subr.mxu0 0.0
    %1347 = vmatpush1.msra.mxu0 0.0
    %1348 = vmatprep.subr.mxu0 0.0
    %1349 = vmatpush1.msra.mxu0 0.0
    %1350 = vmatprep.subr.mxu0 0.0
    %1351 = vmatpush1.msra.mxu0 0.0
    %1352 = vmatprep.subr.mxu0 0.0
    %1353 = vmatpush1.msra.mxu0 0.0
    %1354 = vmatprep.subr.mxu0 0.0
    %1355 = vmatpush1.msra.mxu0 0.0
    %1356 = vmatprep.subr.mxu0 0.0
    %1357 = vmatpush1.msra.mxu0 0.0
    %1358 = vmatprep.subr.mxu0 0.0
    %1359 = vmatpush1.msra.mxu0 0.0
    %1360 = vmatprep.subr.mxu0 0.0
    %1361 = vmatpush1.msra.mxu0 0.0
    %1362 = vmatprep.subr.mxu0 0.0
    %1363 = vmatpush1.msra.mxu0 0.0
    %1364 = vmatprep.subr.mxu0 0.0
    %1365 = vmatpush1.msra.mxu0 0.0
    %1366 = vmatprep.subr.mxu0 0.0
    %1367 = vmatpush1.msra.mxu0 0.0
    %1368 = vmatprep.mubr.f32.mxu0 0.0
    %1369 = vmatmul.mubr.f32.gmra.mrb[0].mxu0 %v1233
    %v1370 = vpop.f32.mrb[0].mxu0
    %v1371 = vadd.f32 %v1114, %v1370
    %v1372 = vpop.f32.mrb[0].mxu0
    %1373 = vmatprep.mubr.f32.mxu0 0.0
    %1374 = vmatmul.mubr.f32.gmra.mrb[0].mxu0 %v1236
    %v1375 = vpop.f32.mrb[0].mxu0
    %v1376 = vadd.f32 %v1119, %v1375
    %v1377 = vpop.f32.mrb[0].mxu0
    %1378 = vmatprep.mubr.f32.mxu0 0.0
    %1379 = vmatmul.mubr.f32.gmra.mrb[0].mxu0 %v1239
    %v1380 = vpop.f32.mrb[0].mxu0
    %v1381 = vadd.f32 %v1124, %v1380
    %v1382 = vpop.f32.mrb[0].mxu0
    %1383 = vmatprep.mubr.f32.mxu0 0.0
    %1384 = vmatmul.mubr.f32.gmra.mrb[0].mxu0 %v1242
    %v1385 = vpop.f32.mrb[0].mxu0
    %v1386 = vadd.f32 %v1129, %v1385
    %v1387 = vpop.f32.mrb[0].mxu0
    %1388 = vmatprep.mubr.f32.mxu0 0.0
    %1389 = vmatmul.mubr.f32.gmra.mrb[0].mxu0 %v1245
    %v1390 = vpop.f32.mrb[0].mxu0
    %v1391 = vadd.f32 %v1134, %v1390
    %v1392 = vpop.f32.mrb[0].mxu0
    %1393 = vmatprep.mubr.f32.mxu0 0.0
    %1394 = vmatmul.mubr.f32.gmra.mrb[0].mxu0 %v1248
    %v1395 = vpop.f32.mrb[0].mxu0
    %v1396 = vadd.f32 %v1139, %v1395
    %v1397 = vpop.f32.mrb[0].mxu0
    %1398 = vmatprep.mubr.f32.mxu0 0.0
    %1399 = vmatmul.mubr.f32.gmra.mrb[0].mxu0 %v1251
    %v1400 = vpop.f32.mrb[0].mxu0
    %v1401 = vadd.f32 %v1144, %v1400
    %v1402 = vpop.f32.mrb[0].mxu0
    %1403 = vmatprep.mubr.f32.mxu0 0.0
    %1404 = vmatmul.mubr.f32.gmra.mrb[0].mxu0 %v1254
    %v1405 = vpop.f32.mrb[0].mxu0
    %v1406 = vadd.f32 %v1149, %v1405
    %v1407 = vpop.f32.mrb[0].mxu0
    %1408 = vmatprep.mubr.f32.mxu0 0.0
    %1409 = vmatmul.mubr.f32.gmra.mrb[0].mxu0 %v1257
    %v1410 = vpop.f32.mrb[0].mxu0
    %v1411 = vadd.f32 %v1154, %v1410
    %v1412 = vpop.f32.mrb[0].mxu0
    %1413 = vmatprep.mubr.f32.mxu0 0.0
    %1414 = vmatmul.mubr.f32.gmra.mrb[0].mxu0 %v1260
    %v1415 = vpop.f32.mrb[0].mxu0
    %v1416 = vadd.f32 %v1159, %v1415
    %v1417 = vpop.f32.mrb[0].mxu0
    %1418 = vmatprep.mubr.f32.mxu0 0.0
    %1419 = vmatmul.mubr.f32.gmra.mrb[0].mxu0 %v1263
    %v1420 = vpop.f32.mrb[0].mxu0
    %v1421 = vadd.f32 %v1164, %v1420
    %v1422 = vpop.f32.mrb[0].mxu0
    %1423 = vmatprep.mubr.f32.mxu0 0.0
    %1424 = vmatmul.mubr.f32.gmra.mrb[0].mxu0 %v1266
    %v1425 = vpop.f32.mrb[0].mxu0
    %v1426 = vadd.f32 %v1169, %v1425
    %v1427 = vpop.f32.mrb[0].mxu0
    %1428 = vmatprep.mubr.f32.mxu0 0.0
    %1429 = vmatmul.mubr.f32.gmra.mrb[0].mxu0 %v1269
    %v1430 = vpop.f32.mrb[0].mxu0
    %v1431 = vadd.f32 %v1174, %v1430
    %v1432 = vpop.f32.mrb[0].mxu0
    %1433 = vmatprep.mubr.f32.mxu0 0.0
    %1434 = vmatmul.mubr.f32.gmra.mrb[0].mxu0 %v1272
    %v1435 = vpop.f32.mrb[0].mxu0
    %v1436 = vadd.f32 %v1179, %v1435
    %v1437 = vpop.f32.mrb[0].mxu0
    %1438 = vmatprep.mubr.f32.mxu0 0.0
    %1439 = vmatmul.mubr.f32.gmra.mrb[0].mxu0 %v1275
    %v1440 = vpop.f32.mrb[0].mxu0
    %v1441 = vadd.f32 %v1184, %v1440
    %v1442 = vpop.f32.mrb[0].mxu0
    %1443 = vmatprep.mubr.f32.mxu0 0.0
    %1444 = vmatmul.mubr.f32.gmra.mrb[0].mxu0 %v1278
    %v1445 = vpop.f32.mrb[0].mxu0
    %v1446 = vadd.f32 %v1189, %v1445
    %v1447 = vpop.f32.mrb[0].mxu0
    %1448 = vmatprep.mubr.f32.mxu0 0.0
    %1449 = vmatmul.mubr.f32.gmra.mrb[0].mxu0 %v1281
    %v1450 = vpop.f32.mrb[0].mxu0
    %v1451 = vadd.f32 %v1194, %v1450
    %v1452 = vpop.f32.mrb[0].mxu0
    %1453 = vmatprep.mubr.f32.mxu0 0.0
    %1454 = vmatmul.mubr.f32.gmra.mrb[0].mxu0 %v1284
    %v1455 = vpop.f32.mrb[0].mxu0
    %v1456 = vadd.f32 %v1199, %v1455
    %v1457 = vpop.f32.mrb[0].mxu0
    %1458 = vmatprep.mubr.f32.mxu0 0.0
    %1459 = vmatmul.mubr.f32.gmra.mrb[0].mxu0 %v1287
    %v1460 = vpop.f32.mrb[0].mxu0
    %v1461 = vadd.f32 %v1204, %v1460
    %v1462 = vpop.f32.mrb[0].mxu0
    %1463 = vmatprep.mubr.f32.mxu0 0.0
    %1464 = vmatmul.mubr.f32.gmra.mrb[0].mxu0 %v1290
    %v1465 = vpop.f32.mrb[0].mxu0
    %v1466 = vadd.f32 %v1209, %v1465
    %v1467 = vpop.f32.mrb[0].mxu0
    %1468 = vmatprep.mubr.f32.mxu0 0.0
    %1469 = vmatmul.mubr.f32.gmra.mrb[0].mxu0 %v1293
    %v1470 = vpop.f32.mrb[0].mxu0
    %v1471 = vadd.f32 %v1214, %v1470
    %v1472 = vpop.f32.mrb[0].mxu0
    %1473 = vmatprep.mubr.f32.mxu0 0.0
    %1474 = vmatmul.mubr.f32.gmra.mrb[0].mxu0 %v1296
    %v1475 = vpop.f32.mrb[0].mxu0
    %v1476 = vadd.f32 %v1219, %v1475
    %v1477 = vpop.f32.mrb[0].mxu0
    %1478 = vmatprep.mubr.f32.mxu0 0.0
    %1479 = vmatmul.mubr.f32.gmra.mrb[0].mxu0 %v1299
    %v1480 = vpop.f32.mrb[0].mxu0
    %v1481 = vadd.f32 %v1224, %v1480
    %v1482 = vpop.f32.mrb[0].mxu0
    %1483 = vmatprep.mubr.f32.mxu0 0.0
    %1484 = vmatmul.mubr.f32.gmra.mrb[0].mxu0 %v1302
    %v1485 = vpop.f32.mrb[0].mxu0
    %v1486 = vadd.f32 %v1229, %v1485
    %v1487 = vpop.f32.mrb[0].mxu0
    %1488 = vdwg.mxu0
    %v1489 = vxor.u32 %v1371, 2147483648
    %v1490 = vxor.u32 %v1376, 2147483648
    %v1491 = vxor.u32 %v1381, 2147483648
    %v1492 = vxor.u32 %v1386, 2147483648
    %v1493 = vxor.u32 %v1391, 2147483648
    %v1494 = vxor.u32 %v1396, 2147483648
    %v1495 = vxor.u32 %v1401, 2147483648
    %v1496 = vxor.u32 %v1406, 2147483648
    %v1497 = vmul.f32 %v1489, 1.442695
    %v1498 = vpow.pop %v1497
    %v1499 = vmul.f32 %v1490, 1.442695
    %v1500 = vpow.pop %v1499
    %v1501 = vmul.f32 %v1491, 1.442695
    %v1502 = vpow.pop %v1501
    %v1503 = vmul.f32 %v1492, 1.442695
    %v1504 = vpow.pop %v1503
    %v1505 = vmul.f32 %v1493, 1.442695
    %v1506 = vpow.pop %v1505
    %v1507 = vmul.f32 %v1494, 1.442695
    %v1508 = vpow.pop %v1507
    %v1509 = vmul.f32 %v1495, 1.442695
    %v1510 = vpow.pop %v1509
    %v1511 = vmul.f32 %v1496, 1.442695
    %v1512 = vpow.pop %v1511
    %v1513 = vadd.f32 %v1498, 1.0
    %v1514 = vadd.f32 %v1500, 1.0
    %v1515 = vadd.f32 %v1502, 1.0
    %v1516 = vadd.f32 %v1504, 1.0
    %v1517 = vadd.f32 %v1506, 1.0
    %v1518 = vadd.f32 %v1508, 1.0
    %v1519 = vadd.f32 %v1510, 1.0
    %v1520 = vadd.f32 %v1512, 1.0
    %v1521 = vrcp.pop %v1513
    %v1522 = vmul.f32 1.0, %v1521
    %v1523 = vrcp.pop %v1514
    %v1524 = vmul.f32 1.0, %v1523
    %v1525 = vrcp.pop %v1515
    %v1526 = vmul.f32 1.0, %v1525
    %v1527 = vrcp.pop %v1516
    %v1528 = vmul.f32 1.0, %v1527
    %v1529 = vrcp.pop %v1517
    %v1530 = vmul.f32 1.0, %v1529
    %v1531 = vrcp.pop %v1518
    %v1532 = vmul.f32 1.0, %v1531
    %v1533 = vrcp.pop %v1519
    %v1534 = vmul.f32 1.0, %v1533
    %v1535 = vrcp.pop %v1520
    %v1536 = vmul.f32 1.0, %v1535
    %v1537 = vld [vmem:[%s10] sm:$0xff]
    %v1538 = vld [vmem:[%s10 + $0x8] sm:$0xff]
    %v1539 = vld [vmem:[%s10 + $0x10] sm:$0xff]
    %v1540 = vld [vmem:[%s10 + $0x18] sm:$0xff]
    %v1541 = vld [vmem:[%s10 + $0x20] sm:$0xff]
    %v1542 = vld [vmem:[%s10 + $0x28] sm:$0xff]
    %v1543 = vld [vmem:[%s10 + $0x30] sm:$0xff]
    %v1544 = vld [vmem:[%s10 + $0x38] sm:$0xff]
    %1546 = vset.pattern.permute.xlu0 0
    %1547 = vperm.xlu0 %1546, %v1537
    %v1548 = vpop.permute.xlu0 %1547
    %1551 = vset.pattern.permute.xlu0 0
    %1552 = vperm.xlu0 %1551, %v1538
    %v1553 = vpop.permute.xlu0 %1552
    %1556 = vset.pattern.permute.xlu0 0
    %1557 = vperm.xlu0 %1556, %v1539
    %v1558 = vpop.permute.xlu0 %1557
    %1561 = vset.pattern.permute.xlu0 0
    %1562 = vperm.xlu0 %1561, %v1540
    %v1563 = vpop.permute.xlu0 %1562
    %1566 = vset.pattern.permute.xlu0 0
    %1567 = vperm.xlu0 %1566, %v1541
    %v1568 = vpop.permute.xlu0 %1567
    %1571 = vset.pattern.permute.xlu0 0
    %1572 = vperm.xlu0 %1571, %v1542
    %v1573 = vpop.permute.xlu0 %1572
    %1576 = vset.pattern.permute.xlu0 0
    %1577 = vperm.xlu0 %1576, %v1543
    %v1578 = vpop.permute.xlu0 %1577
    %1581 = vset.pattern.permute.xlu0 0
    %1582 = vperm.xlu0 %1581, %v1544
    %v1583 = vpop.permute.xlu0 %1582
    %v1585 = vmul.f32 %v1522, %v1548
    %v1586 = vmul.f32 %v1524, %v1553
    %v1587 = vmul.f32 %v1526, %v1558
    %v1588 = vmul.f32 %v1528, %v1563
    %v1589 = vmul.f32 %v1530, %v1568
    %v1590 = vmul.f32 %v1532, %v1573
    %v1591 = vmul.f32 %v1534, %v1578
    %v1592 = vmul.f32 %v1536, %v1583
    %v1593 = vadd.f32 %v1451, %v1585
    %v1594 = vadd.f32 %v1456, %v1586
    %v1595 = vadd.f32 %v1461, %v1587
    %v1596 = vadd.f32 %v1466, %v1588
    %v1597 = vadd.f32 %v1471, %v1589
    %v1598 = vadd.f32 %v1476, %v1590
    %v1599 = vadd.f32 %v1481, %v1591
    %v1600 = vadd.f32 %v1486, %v1592
    %v1601 = vtanh.pop %v1593
    %v1602 = vtanh.pop %v1594
    %v1603 = vtanh.pop %v1595
    %v1604 = vtanh.pop %v1596
    %v1605 = vtanh.pop %v1597
    %v1606 = vtanh.pop %v1598
    %v1607 = vtanh.pop %v1599
    %v1608 = vtanh.pop %v1600
    %v1609 = vsub.f32 0.0, %v1411
    %v1610 = vsub.f32 0.0, %v1416
    %v1611 = vsub.f32 0.0, %v1421
    %v1612 = vsub.f32 0.0, %v1426
    %v1613 = vsub.f32 0.0, %v1431
    %v1614 = vsub.f32 0.0, %v1436
    %v1615 = vsub.f32 0.0, %v1441
    %v1616 = vsub.f32 0.0, %v1446
    %v1617 = vxor.u32 %v1609, 2147483648
    %v1618 = vxor.u32 %v1610, 2147483648
    %v1619 = vxor.u32 %v1611, 2147483648
    %v1620 = vxor.u32 %v1612, 2147483648
    %v1621 = vxor.u32 %v1613, 2147483648
    %v1622 = vxor.u32 %v1614, 2147483648
    %v1623 = vxor.u32 %v1615, 2147483648
    %v1624 = vxor.u32 %v1616, 2147483648
    %v1625 = vmul.f32 %v1617, 1.442695
    %v1626 = vpow.pop %v1625
    %v1627 = vmul.f32 %v1618, 1.442695
    %v1628 = vpow.pop %v1627
    %v1629 = vmul.f32 %v1619, 1.442695
    %v1630 = vpow.pop %v1629
    %v1631 = vmul.f32 %v1620, 1.442695
    %v1632 = vpow.pop %v1631
    %v1633 = vmul.f32 %v1621, 1.442695
    %v1634 = vpow.pop %v1633
    %v1635 = vmul.f32 %v1622, 1.442695
    %v1636 = vpow.pop %v1635
    %v1637 = vmul.f32 %v1623, 1.442695
    %v1638 = vpow.pop %v1637
    %v1639 = vmul.f32 %v1624, 1.442695
    %v1640 = vpow.pop %v1639
    %v1641 = vadd.f32 %v1626, 1.0
    %v1642 = vadd.f32 %v1628, 1.0
    %v1643 = vadd.f32 %v1630, 1.0
    %v1644 = vadd.f32 %v1632, 1.0
    %v1645 = vadd.f32 %v1634, 1.0
    %v1646 = vadd.f32 %v1636, 1.0
    %v1647 = vadd.f32 %v1638, 1.0
    %v1648 = vadd.f32 %v1640, 1.0
    %v1649 = vrcp.pop %v1641
    %v1650 = vmul.f32 1.0, %v1649
    %v1651 = vrcp.pop %v1642
    %v1652 = vmul.f32 1.0, %v1651
    %v1653 = vrcp.pop %v1643
    %v1654 = vmul.f32 1.0, %v1653
    %v1655 = vrcp.pop %v1644
    %v1656 = vmul.f32 1.0, %v1655
    %v1657 = vrcp.pop %v1645
    %v1658 = vmul.f32 1.0, %v1657
    %v1659 = vrcp.pop %v1646
    %v1660 = vmul.f32 1.0, %v1659
    %v1661 = vrcp.pop %v1647
    %v1662 = vmul.f32 1.0, %v1661
    %v1663 = vrcp.pop %v1648
    %v1664 = vmul.f32 1.0, %v1663
    %v1665 = vmul.f32 %v1650, %v1601
    %v1666 = vmul.f32 %v1652, %v1602
    %v1667 = vmul.f32 %v1654, %v1603
    %v1668 = vmul.f32 %v1656, %v1604
    %v1669 = vmul.f32 %v1658, %v1605
    %v1670 = vmul.f32 %v1660, %v1606
    %v1671 = vmul.f32 %v1662, %v1607
    %v1672 = vmul.f32 %v1664, %v1608
    %v1673 = vld [vmem:[%s11] sm:$0xff]
    %v1674 = vld [vmem:[%s12] sm:$0xff]
    %1676 = vset.pattern.permute.xlu0 0
    %1677 = vperm.xlu0 %1676, %v1674
    %v1678 = vpop.permute.xlu0 %1677
    %v1681 = vsel %vm1231, %v1673, 0
    %1683 = vmatprep.subr.mxu0 0.0
    %1684 = vmatpush1.msra.mxu0 %v1665
    %1685 = vmatprep.subr.mxu0 0.0
    %1686 = vmatpush1.msra.mxu0 %v1666
    %1687 = vmatprep.subr.mxu0 0.0
    %1688 = vmatpush1.msra.mxu0 %v1667
    %1689 = vmatprep.subr.mxu0 0.0
    %1690 = vmatpush1.msra.mxu0 %v1668
    %1691 = vmatprep.subr.mxu0 0.0
    %1692 = vmatpush1.msra.mxu0 %v1669
    %1693 = vmatprep.subr.mxu0 0.0
    %1694 = vmatpush1.msra.mxu0 %v1670
    %1695 = vmatprep.subr.mxu0 0.0
    %1696 = vmatpush1.msra.mxu0 %v1671
    %1697 = vmatprep.subr.mxu0 0.0
    %1698 = vmatpush1.msra.mxu0 %v1672
    %1699 = vmatprep.subr.mxu0 0.0
    %1700 = vmatpush1.msra.mxu0 0.0
    %1701 = vmatprep.subr.mxu0 0.0
    %1702 = vmatpush1.msra.mxu0 0.0
    %1703 = vmatprep.subr.mxu0 0.0
    %1704 = vmatpush1.msra.mxu0 0.0
    %1705 = vmatprep.subr.mxu0 0.0
    %1706 = vmatpush1.msra.mxu0 0.0
    %1707 = vmatprep.subr.mxu0 0.0
    %1708 = vmatpush1.msra.mxu0 0.0
    %1709 = vmatprep.subr.mxu0 0.0
    %1710 = vmatpush1.msra.mxu0 0.0
    %1711 = vmatprep.subr.mxu0 0.0
    %1712 = vmatpush1.msra.mxu0 0.0
    %1713 = vmatprep.subr.mxu0 0.0
    %1714 = vmatpush1.msra.mxu0 0.0
    %1715 = vmatprep.subr.mxu0 0.0
    %1716 = vmatpush1.msra.mxu0 0.0
    %1717 = vmatprep.subr.mxu0 0.0
    %1718 = vmatpush1.msra.mxu0 0.0
    %1719 = vmatprep.subr.mxu0 0.0
    %1720 = vmatpush1.msra.mxu0 0.0
    %1721 = vmatprep.subr.mxu0 0.0
    %1722 = vmatpush1.msra.mxu0 0.0
    %1723 = vmatprep.subr.mxu0 0.0
    %1724 = vmatpush1.msra.mxu0 0.0
    %1725 = vmatprep.subr.mxu0 0.0
    %1726 = vmatpush1.msra.mxu0 0.0
    %1727 = vmatprep.subr.mxu0 0.0
    %1728 = vmatpush1.msra.mxu0 0.0
    %1729 = vmatprep.subr.mxu0 0.0
    %1730 = vmatpush1.msra.mxu0 0.0
    %1731 = vmatprep.subr.mxu0 0.0
    %1732 = vmatpush1.msra.mxu0 0.0
    %1733 = vmatprep.subr.mxu0 0.0
    %1734 = vmatpush1.msra.mxu0 0.0
    %1735 = vmatprep.subr.mxu0 0.0
    %1736 = vmatpush1.msra.mxu0 0.0
    %1737 = vmatprep.subr.mxu0 0.0
    %1738 = vmatpush1.msra.mxu0 0.0
    %1739 = vmatprep.subr.mxu0 0.0
    %1740 = vmatpush1.msra.mxu0 0.0
    %1741 = vmatprep.subr.mxu0 0.0
    %1742 = vmatpush1.msra.mxu0 0.0
    %1743 = vmatprep.subr.mxu0 0.0
    %1744 = vmatpush1.msra.mxu0 0.0
    %1745 = vmatprep.subr.mxu0 0.0
    %1746 = vmatpush1.msra.mxu0 0.0
    %1747 = vmatprep.mubr.f32.mxu0 0.0
    %1748 = vmatmul.mubr.f32.gmra.mrb[0].mxu0 %v1681
    %v1749 = vpop.f32.mrb[0].mxu0
    %v1750 = vadd.f32 %v1678, %v1749
    %v1751 = vpop.f32.mrb[0].mxu0
    %1752 = vdwg.mxu0
    %v1753 = vmax.f32 %v1750, 0.0
    %v1754 = vld [vmem:[%s13] sm:$0x3]
    %v1755 = vld [vmem:[%s14] sm:$0x3]
    %1757 = vset.pattern.permute.xlu0 0
    %1758 = vperm.xlu0 %1757, %v1755
    %v1759 = vpop.permute.xlu0 %1758
    %vm1761 = vcmask 64512
    %v1763 = vsel %vm1761, %v1754, 0
    %1765 = vmatprep.subr.mxu0 0.0
    %1766 = vmatpush1.msra.mxu0 %v1753
    %1767 = vmatprep.subr.mxu0 0.0
    %1768 = vmatpush1.msra.mxu0 0.0
    %1769 = vmatprep.subr.mxu0 0.0
    %1770 = vmatpush1.msra.mxu0 0.0
    %1771 = vmatprep.subr.mxu0 0.0
    %1772 = vmatpush1.msra.mxu0 0.0
    %1773 = vmatprep.subr.mxu0 0.0
    %1774 = vmatpush1.msra.mxu0 0.0
    %1775 = vmatprep.subr.mxu0 0.0
    %1776 = vmatpush1.msra.mxu0 0.0
    %1777 = vmatprep.subr.mxu0 0.0
    %1778 = vmatpush1.msra.mxu0 0.0
    %1779 = vmatprep.subr.mxu0 0.0
    %1780 = vmatpush1.msra.mxu0 0.0
    %1781 = vmatprep.subr.mxu0 0.0
    %1782 = vmatpush1.msra.mxu0 0.0
    %1783 = vmatprep.subr.mxu0 0.0
    %1784 = vmatpush1.msra.mxu0 0.0
    %1785 = vmatprep.subr.mxu0 0.0
    %1786 = vmatpush1.msra.mxu0 0.0
    %1787 = vmatprep.subr.mxu0 0.0
    %1788 = vmatpush1.msra.mxu0 0.0
    %1789 = vmatprep.subr.mxu0 0.0
    %1790 = vmatpush1.msra.mxu0 0.0
    %1791 = vmatprep.subr.mxu0 0.0
    %1792 = vmatpush1.msra.mxu0 0.0
    %1793 = vmatprep.subr.mxu0 0.0
    %1794 = vmatpush1.msra.mxu0 0.0
    %1795 = vmatprep.subr.mxu0 0.0
    %1796 = vmatpush1.msra.mxu0 0.0
    %1797 = vmatprep.subr.mxu0 0.0
    %1798 = vmatpush1.msra.mxu0 0.0
    %1799 = vmatprep.subr.mxu0 0.0
    %1800 = vmatpush1.msra.mxu0 0.0
    %1801 = vmatprep.subr.mxu0 0.0
    %1802 = vmatpush1.msra.mxu0 0.0
    %1803 = vmatprep.subr.mxu0 0.0
    %1804 = vmatpush1.msra.mxu0 0.0
    %1805 = vmatprep.subr.mxu0 0.0
    %1806 = vmatpush1.msra.mxu0 0.0
    %1807 = vmatprep.subr.mxu0 0.0
    %1808 = vmatpush1.msra.mxu0 0.0
    %1809 = vmatprep.subr.mxu0 0.0
    %1810 = vmatpush1.msra.mxu0 0.0
    %1811 = vmatprep.subr.mxu0 0.0
    %1812 = vmatpush1.msra.mxu0 0.0
    %1813 = vmatprep.subr.mxu0 0.0
    %1814 = vmatpush1.msra.mxu0 0.0
    %1815 = vmatprep.subr.mxu0 0.0
    %1816 = vmatpush1.msra.mxu0 0.0
    %1817 = vmatprep.subr.mxu0 0.0
    %1818 = vmatpush1.msra.mxu0 0.0
    %1819 = vmatprep.subr.mxu0 0.0
    %1820 = vmatpush1.msra.mxu0 0.0
    %1821 = vmatprep.subr.mxu0 0.0
    %1822 = vmatpush1.msra.mxu0 0.0
    %1823 = vmatprep.subr.mxu0 0.0
    %1824 = vmatpush1.msra.mxu0 0.0
    %1825 = vmatprep.subr.mxu0 0.0
    %1826 = vmatpush1.msra.mxu0 0.0
    %1827 = vmatprep.subr.mxu0 0.0
    %1828 = vmatpush1.msra.mxu0 0.0
    %1829 = vmatprep.mubr.f32.mxu0 0.0
    %1830 = vmatmul.mubr.f32.gmra.mrb[0].mxu0 %v1763
    %v1831 = vpop.f32.mrb[0].mxu0
    %v1832 = vadd.f32 %v1759, %v1831
    %v1833 = vpop.f32.mrb[0].mxu0
    %1834 = vdwg.mxu0
    %1835 = vst [vmem:[#allocation2] sm:$0x3] %v1832
    // Predicated region
    $region62: #{tpu_custom_call.1} parent=1 // pred_check
      _
    $region63: #{tpu_custom_call.1} parent=1 // pred_check_branch
      %1837 = sbr.rel (0) target = $region65
    $region64: #{tpu_custom_call.1} parent=1 // pred_region
      %s1839 = ssub.s32 32, 32
      %1840 = vsyncadd [#allocation3], %s1839
      %s1842 = sshll.u32 [#allocation2], 4
      %s1843 = int_to_ptr.vmem [resolvable:$true] %s1842
      %1845 = dma.vmem_to_hbm [thread:$0]  %s1843, 32, %s15, [#allocation3]
    $region65: #{tpu_custom_call.1} parent=1 // pred_fallthru
      _
    // Predicated region
    $region66: #{tpu_custom_call.1} parent=1 // pred_check
      _
    $region67: #{tpu_custom_call.1} parent=1 // pred_check_branch
      %1847 = sbr.rel (0) target = $region69
    $region68: #{tpu_custom_call.1} parent=1 // pred_region
      %1848 = dma.done [#allocation3], 32
    $region69: #{tpu_custom_call.1} parent=1 // pred_fallthru
      _
    %1849 = vsyncpa [#allocation3], 1

</llo_original>
